<compile_context>
chip_gen: v7x
topology: tpu7x:2x2x1
jax: 0.10.0
libtpu: 0.0.40
codegen_flags: <defaults>
</compile_context>

<pallas_src>
import jax
import jax.numpy as jnp
from jax.experimental import pallas as pl
from jax.experimental.pallas import tpu as pltpu


def _round_up(n, m):
    return ((n + m - 1) // m) * m


def ae_fused_kernel(x_ref,
                    w1_ref, b1_ref,     # encoder fc1: (D, H) bf16, (1, H) f32
                    w23_ref, b23_ref,   # fused bottleneck: (H, H) bf16, (1, H) f32
                    w4_ref, b4_ref,     # decoder fc2: (H, D) bf16, (1, D) f32
                    out_ref):
    """One (TM, D) batch tile: encode + decode fully fused on the MXU/VPU.

    x_ref holds f32 rows; the bf16 cast for the MXU happens here so x only
    crosses HBM once.  Accumulation is f32 (preferred_element_type); bias-add
    and ReLU stay f32 (v5e has no bf16 VPU path).
    """
    md = w1_ref.dtype
    b1 = b1_ref[...]
    b23 = b23_ref[...]
    b4 = b4_ref[...]

    # encoder fc1 + ReLU
    h1 = jnp.dot(x_ref[...].astype(md), w1_ref[...],
                 preferred_element_type=jnp.float32) + b1
    h1 = jnp.maximum(h1, 0.0)

    # fused (encoder fc2 @ decoder fc1) + fused bias + ReLU
    # (valid because there is no nonlinearity on the latent in this AE)
    h2 = jnp.dot(h1.astype(md), w23_ref[...],
                 preferred_element_type=jnp.float32) + b23
    h2 = jnp.maximum(h2, 0.0)

    # decoder fc2 (reconstruction)
    recon = jnp.dot(h2.astype(md), w4_ref[...],
                    preferred_element_type=jnp.float32) + b4
    out_ref[...] = recon.astype(out_ref.dtype)


def prepare_params(params, *, matmul_dtype=jnp.bfloat16):
    """One-time (load-time) weight prep, hoisted out of the forward path:
      * fuse the rank-L linear bottleneck: W23 = w2 @ w3, b23 = b2 @ w3 + b3
        (no activation between encoder fc2 and decoder fc1, so this is exact
        up to f32 rounding)
      * cast matmul weights to bf16 for the MXU fast path; biases stay f32.
    """
    (w1, b1), (w2, b2), (w3, b3), (w4, b4) = params
    md = jnp.dtype(matmul_dtype)
    w23 = w2 @ w3                       # (HID, HID), computed in f32 then cast
    b23 = b2 @ w3 + b3                  # (1, HID)
    f32 = jnp.float32
    return dict(
        w1=w1.astype(md), b1=jnp.reshape(b1, (1, -1)).astype(f32),
        w23=w23.astype(md), b23=jnp.reshape(b23, (1, -1)).astype(f32),
        w4=w4.astype(md), b4=jnp.reshape(b4, (1, -1)).astype(f32),
    )


def ae_forward(x_nchw, prepared, *, tm=512, out_dtype=None):
    """AE.forward: recon = decode(encode(x)).  x_nchw: (B, C, H, W) float32.

    tm: max rows per grid tile (512 fits every generation's VMEM with the
    explicit vmem_limit below; 1024 is also fine on v6e/v7x).  tm is clamped
    to the sublane-aligned batch so small batches don't DMA dead rows, and the
    batch grid is split into >= 2 tiles when possible (v7x megacore).
    out_dtype: set to jnp.bfloat16 to cut output HBM traffic ~2x if downstream
    consumers accept bf16; default keeps the input dtype (f32).
    """
    B, C, H, W = x_nchw.shape
    D = C * H * W
    w1, b1 = prepared["w1"], prepared["b1"]
    w23, b23 = prepared["w23"], prepared["b23"]
    w4, b4 = prepared["w4"], prepared["b4"]
    HID = w1.shape[1]
    assert w1.shape[0] == D, "flattened feature dim must match encoder fc1"
    assert D % 128 == 0 and HID % 128 == 0, "feature dims must be lane-aligned"

    out_dtype = x_nchw.dtype if out_dtype is None else jnp.dtype(out_dtype)
    x_flat = x_nchw.reshape(B, D)          # f32; bf16 cast happens in-kernel

    # ---- batch tiling -------------------------------------------------------
    SUB = 8                                # f32 sublane multiple
    b_aligned = _round_up(B, SUB)
    tm_eff = min(tm, b_aligned)
    # v7x has 2 TensorCores: make sure the "parallel" batch axis has >= 2
    # tiles whenever the batch is big enough to split.
    if b_aligned >= 2 * SUB and pl.cdiv(b_aligned, tm_eff) < 2:
        tm_eff = _round_up(b_aligned // 2, SUB)
    B_pad = _round_up(B, tm_eff)
    n_tiles = B_pad // tm_eff
    if B_pad != B:
        # Minimal padding (at most tm_eff-1 rows); padded rows are sliced off.
        x_flat = jnp.pad(x_flat, ((0, B_pad - B), (0, 0)))

    # ---- cost / VMEM budget -------------------------------------------------
    wdt = jnp.dtype(w1.dtype)
    weight_bytes = (w1.size + w23.size + w4.size) * wdt.itemsize
    bias_bytes = (b1.size + b23.size + b4.size) * 4
    flops = 2 * B * (D * HID + HID * HID + HID * D)
    bytes_accessed = (B_pad * D * jnp.dtype(x_flat.dtype).itemsize   # x in
                      + weight_bytes + bias_bytes                    # weights
                      + B_pad * D * out_dtype.itemsize)              # recon out

    # Explicit VMEM budget (v5e's scoped default is only 16 MiB): double-
    # buffered x/out tiles + resident weights + headroom for f32 temporaries.
    tile_bytes = tm_eff * D * (jnp.dtype(x_flat.dtype).itemsize
                               + out_dtype.itemsize)
    vmem_est = (2 * tile_bytes + 2 * (weight_bytes + bias_bytes)
                + 4 * tm_eff * (2 * HID + D) * 4 + (4 << 20))
    vmem_limit = int(max(16 << 20, min(64 << 20, vmem_est)))

    # ---- BlockSpecs ---------------------------------------------------------
    # Weights/biases: constant index_map -> VMEM-resident across the grid.
    # pl.Buffered(1) skips their (pointless) double buffer to save VMEM; if
    # that pipeline mode is unsupported we fall back to default pipelining.
    def build_specs(single_buffer_weights):
        if single_buffer_weights:
            def w_spec(shape):
                return pl.BlockSpec(shape, lambda i: (0, 0),
                                    pipeline_mode=pl.Buffered(buffer_count=1))
        else:
            def w_spec(shape):
                return pl.BlockSpec(shape, lambda i: (0, 0))
        in_specs = [
            pl.BlockSpec((tm_eff, D), lambda i: (i, 0)),   # x tile (f32)
            w_spec((D, HID)), w_spec((1, HID)),            # w1, b1
            w_spec((HID, HID)), w_spec((1, HID)),          # w23, b23
            w_spec((HID, D)), w_spec((1, D)),              # w4, b4
        ]
        out_spec = pl.BlockSpec((tm_eff, D), lambda i: (i, 0))
        return in_specs, out_spec

    recon_flat = None
    for single_buf in (True, False):
        in_specs, out_spec = build_specs(single_buf)
        try:
            recon_flat = pl.pallas_call(
                ae_fused_kernel,
                out_shape=jax.ShapeDtypeStruct((B_pad, D), out_dtype),
                grid=(n_tiles,),
                in_specs=in_specs,
                out_specs=out_spec,
                compiler_params=pltpu.CompilerParams(
                    dimension_semantics=("parallel",),
                    vmem_limit_bytes=vmem_limit,
                ),
                cost_estimate=pl.CostEstimate(
                    flops=flops, transcendentals=0,
                    bytes_accessed=int(bytes_accessed)),
            )(x_flat, w1, b1, w23, b23, w4, b4)
            break
        except Exception:
            if not single_buf:
                raise
            # Buffered(1) not supported by this jax/Mosaic build; retry with
            # the default (double-buffered) weight specs.
            continue

    return recon_flat[:B].reshape(B, C, H, W)


def init_params(key, D, H, L):
    """Deterministic synthetic weights (shapes an MLP AE's __init__ implies)."""
    ks = jax.random.split(key, 8)

    def lin(kw, kb, fan_in, fan_out):
        scale = 1.0 / jnp.sqrt(jnp.float32(fan_in))
        w = jax.random.uniform(kw, (fan_in, fan_out), jnp.float32, -scale, scale)
        b = jax.random.uniform(kb, (1, fan_out), jnp.float32, -scale, scale)
        return w, b

    return (
        lin(ks[0], ks[1], D, H),   # encoder fc1
        lin(ks[2], ks[3], H, L),   # encoder fc2 (latent)
        lin(ks[4], ks[5], L, H),   # decoder fc1
        lin(ks[6], ks[7], H, D),   # decoder fc2 (reconstruction)
    )


if __name__ == "__main__":
    key = jax.random.PRNGKey(0)
    k_x, k_p = jax.random.split(key)

    B, C, Himg, Wimg = 2, 4, 16, 16          # small NCHW input
    D = C * Himg * Wimg                      # 1024 flattened features
    HID, LAT = 128, 32                       # hidden width, latent dim

    x = jax.random.normal(k_x, (B, C, Himg, Wimg), dtype=jnp.float32)
    params = init_params(k_p, D, HID, LAT)

    # Weight prep (bottleneck fusion + bf16 casts) hoisted out of forward.
    prepared = prepare_params(params)

    recon = ae_forward(x, prepared)          # adaptive tm, f32 output
    recon = jax.block_until_ready(recon)

    # --- references ----------------------------------------------------------
    (w1, b1), (w2, b2), (w3, b3), (w4, b4) = params
    xf = x.reshape(B, D)

    # f32 reference (exact PyTorch forward semantics)
    h1 = jnp.maximum(xf @ w1 + b1, 0.0)
    z = h1 @ w2 + b2
    h2 = jnp.maximum(z @ w3 + b3, 0.0)
    ref_f32 = (h2 @ w4 + b4).reshape(B, C, Himg, Wimg)

    # bf16 / fused reference mirroring the kernel's numerics
    h1b = jnp.maximum(
        jnp.dot(xf.astype(jnp.bfloat16), prepared["w1"],
                preferred_element_type=jnp.float32) + prepared["b1"], 0.0)
    h2b = jnp.maximum(
        jnp.dot(h1b.astype(jnp.bfloat16), prepared["w23"],
                preferred_element_type=jnp.float32) + prepared["b23"], 0.0)
    ref_bf16 = (jnp.dot(h2b.astype(jnp.bfloat16), prepared["w4"],
                        preferred_element_type=jnp.float32)
                + prepared["b4"]).reshape(B, C, Himg, Wimg)

    assert recon.shape == x.shape and recon.dtype == x.dtype
    assert jnp.allclose(recon, ref_bf16, atol=2e-3, rtol=2e-3)
    assert jnp.allclose(recon, ref_f32, atol=5e-2, rtol=5e-2)

    print("KERNEL_OK")
</pallas_src>

<mosaic_0001>
module attributes {stable_mosaic.version = 11 : i64} {
  func.func @ae_fused_kernel(%arg0: i32, %arg1: memref<8x1024xf32, #tpu.memory_space<vmem>>, %arg2: memref<1024x128xbf16, #tpu.memory_space<vmem>>, %arg3: memref<1x128xf32, #tpu.memory_space<vmem>>, %arg4: memref<128x128xbf16, #tpu.memory_space<vmem>>, %arg5: memref<1x128xf32, #tpu.memory_space<vmem>>, %arg6: memref<128x1024xbf16, #tpu.memory_space<vmem>>, %arg7: memref<1x1024xf32, #tpu.memory_space<vmem>>, %arg8: memref<8x1024xf32, #tpu.memory_space<vmem>>) attributes {dimension_semantics = [#tpu.dimension_semantics<parallel>], iteration_bounds = array<i64: 1>, scalar_prefetch = 0 : i64, scratch_operands = 0 : i64, tpu.core_type = #tpu.core_type<tc>, window_params = [{transform_indices = @transform_0, window_bounds = array<i64: 8, 1024>}, {pipeline_mode = #tpu.pipeline_mode<synchronous>, transform_indices = @transform_1, window_bounds = array<i64: 1024, 128>}, {pipeline_mode = #tpu.pipeline_mode<synchronous>, transform_indices = @transform_2, window_bounds = array<i64: 1, 128>}, {pipeline_mode = #tpu.pipeline_mode<synchronous>, transform_indices = @transform_3, window_bounds = array<i64: 128, 128>}, {pipeline_mode = #tpu.pipeline_mode<synchronous>, transform_indices = @transform_4, window_bounds = array<i64: 1, 128>}, {pipeline_mode = #tpu.pipeline_mode<synchronous>, transform_indices = @transform_5, window_bounds = array<i64: 128, 1024>}, {pipeline_mode = #tpu.pipeline_mode<synchronous>, transform_indices = @transform_6, window_bounds = array<i64: 1, 1024>}, {transform_indices = @transform_7, window_bounds = array<i64: 8, 1024>}]} {
    %c0 = arith.constant 0 : index
    %c0_0 = arith.constant 0 : index
    %0 = vector.load %arg3[%c0, %c0_0] : memref<1x128xf32, #tpu.memory_space<vmem>>, vector<1x128xf32>
    %c0_1 = arith.constant 0 : index
    %c0_2 = arith.constant 0 : index
    %1 = vector.load %arg5[%c0_1, %c0_2] : memref<1x128xf32, #tpu.memory_space<vmem>>, vector<1x128xf32>
    %c0_3 = arith.constant 0 : index
    %c0_4 = arith.constant 0 : index
    %2 = vector.load %arg7[%c0_3, %c0_4] : memref<1x1024xf32, #tpu.memory_space<vmem>>, vector<1x1024xf32>
    %c0_5 = arith.constant 0 : index
    %c0_6 = arith.constant 0 : index
    %3 = vector.load %arg1[%c0_5, %c0_6] : memref<8x1024xf32, #tpu.memory_space<vmem>>, vector<8x1024xf32>
    %4 = arith.truncf %3 : vector<8x1024xf32> to vector<8x1024xbf16>
    %c0_7 = arith.constant 0 : index
    %c0_8 = arith.constant 0 : index
    %5 = vector.load %arg2[%c0_7, %c0_8] : memref<1024x128xbf16, #tpu.memory_space<vmem>>, vector<1024x128xbf16>
    %cst = arith.constant dense<0.000000e+00> : vector<8x128xf32>
    %6 = tpu.matmul %4, %5, %cst {dimension_numbers = #tpu.dot_dimension_numbers<[1], [0], [0], [1], [0, 0, 1, 1], [], []>} : vector<8x1024xbf16>, vector<1024x128xbf16>, vector<8x128xf32> -> vector<8x128xf32>
    %7 = vector.broadcast %0 : vector<1x128xf32> to vector<8x128xf32>
    %8 = arith.addf %6, %7 : vector<8x128xf32>
    %cst_9 = arith.constant 0.000000e+00 : f32
    %9 = vector.broadcast %cst_9 : f32 to vector<8x128xf32>
    %10 = arith.maximumf %8, %9 : vector<8x128xf32>
    %11 = arith.truncf %10 : vector<8x128xf32> to vector<8x128xbf16>
    %c0_10 = arith.constant 0 : index
    %c0_11 = arith.constant 0 : index
    %12 = vector.load %arg4[%c0_10, %c0_11] : memref<128x128xbf16, #tpu.memory_space<vmem>>, vector<128x128xbf16>
    %cst_12 = arith.constant dense<0.000000e+00> : vector<8x128xf32>
    %13 = tpu.matmul %11, %12, %cst_12 {dimension_numbers = #tpu.dot_dimension_numbers<[1], [0], [0], [1], [0, 0, 1, 1], [], []>} : vector<8x128xbf16>, vector<128x128xbf16>, vector<8x128xf32> -> vector<8x128xf32>
    %14 = vector.broadcast %1 : vector<1x128xf32> to vector<8x128xf32>
    %15 = arith.addf %13, %14 : vector<8x128xf32>
    %cst_13 = arith.constant 0.000000e+00 : f32
    %16 = vector.broadcast %cst_13 : f32 to vector<8x128xf32>
    %17 = arith.maximumf %15, %16 : vector<8x128xf32>
    %18 = arith.truncf %17 : vector<8x128xf32> to vector<8x128xbf16>
    %c0_14 = arith.constant 0 : index
    %c0_15 = arith.constant 0 : index
    %19 = vector.load %arg6[%c0_14, %c0_15] : memref<128x1024xbf16, #tpu.memory_space<vmem>>, vector<128x1024xbf16>
    %cst_16 = arith.constant dense<0.000000e+00> : vector<8x1024xf32>
    %20 = tpu.matmul %18, %19, %cst_16 {dimension_numbers = #tpu.dot_dimension_numbers<[1], [0], [0], [1], [0, 0, 1, 1], [], []>} : vector<8x128xbf16>, vector<128x1024xbf16>, vector<8x1024xf32> -> vector<8x1024xf32>
    %21 = vector.broadcast %2 : vector<1x1024xf32> to vector<8x1024xf32>
    %22 = arith.addf %20, %21 : vector<8x1024xf32>
    %c0_17 = arith.constant 0 : index
    %c0_18 = arith.constant 0 : index
    %23 = vector.load %arg8[%c0_17, %c0_18] : memref<8x1024xf32, #tpu.memory_space<vmem>>, vector<8x1024xf32>
    tpu.vector_store %arg8[%c0_17, %c0_18], %22 {strides = array<i32>} : memref<8x1024xf32, #tpu.memory_space<vmem>>, vector<8x1024xf32>,
    return
  }
  func.func @transform_0(%arg0: i32) -> (i32, i32) {
    %c0_i32 = arith.constant 0 : i32
    %c0_i32_0 = arith.constant 0 : i32
    return %arg0, %c0_i32 : i32, i32
  }
  func.func @transform_1(%arg0: i32) -> (i32, i32) {
    %c0_i32 = arith.constant 0 : i32
    %c0_i32_0 = arith.constant 0 : i32
    %c0_i32_1 = arith.constant 0 : i32
    return %c0_i32, %c0_i32_0 : i32, i32
  }
  func.func @transform_2(%arg0: i32) -> (i32, i32) {
    %c0_i32 = arith.constant 0 : i32
    %c0_i32_0 = arith.constant 0 : i32
    %c0_i32_1 = arith.constant 0 : i32
    return %c0_i32, %c0_i32_0 : i32, i32
  }
  func.func @transform_3(%arg0: i32) -> (i32, i32) {
    %c0_i32 = arith.constant 0 : i32
    %c0_i32_0 = arith.constant 0 : i32
    %c0_i32_1 = arith.constant 0 : i32
    return %c0_i32, %c0_i32_0 : i32, i32
  }
  func.func @transform_4(%arg0: i32) -> (i32, i32) {
    %c0_i32 = arith.constant 0 : i32
    %c0_i32_0 = arith.constant 0 : i32
    %c0_i32_1 = arith.constant 0 : i32
    return %c0_i32, %c0_i32_0 : i32, i32
  }
  func.func @transform_5(%arg0: i32) -> (i32, i32) {
    %c0_i32 = arith.constant 0 : i32
    %c0_i32_0 = arith.constant 0 : i32
    %c0_i32_1 = arith.constant 0 : i32
    return %c0_i32, %c0_i32_0 : i32, i32
  }
  func.func @transform_6(%arg0: i32) -> (i32, i32) {
    %c0_i32 = arith.constant 0 : i32
    %c0_i32_0 = arith.constant 0 : i32
    %c0_i32_1 = arith.constant 0 : i32
    return %c0_i32, %c0_i32_0 : i32, i32
  }
  func.func @transform_7(%arg0: i32) -> (i32, i32) {
    %c0_i32 = arith.constant 0 : i32
    %c0_i32_0 = arith.constant 0 : i32
    return %arg0, %c0_i32 : i32, i32
  }
}

module attributes {stable_mosaic.version = 11 : i64} {
  func.func @ae_fused_kernel(%arg0: i32, %arg1: memref<8x1024xf32, #tpu.memory_space<vmem>>, %arg2: memref<1024x128xbf16, #tpu.memory_space<vmem>>, %arg3: memref<1x128xf32, #tpu.memory_space<vmem>>, %arg4: memref<128x128xbf16, #tpu.memory_space<vmem>>, %arg5: memref<1x128xf32, #tpu.memory_space<vmem>>, %arg6: memref<128x1024xbf16, #tpu.memory_space<vmem>>, %arg7: memref<1x1024xf32, #tpu.memory_space<vmem>>, %arg8: memref<8x1024xf32, #tpu.memory_space<vmem>>) attributes {dimension_semantics = [#tpu.dimension_semantics<parallel>], iteration_bounds = array<i64: 1>, scalar_prefetch = 0 : i64, scratch_operands = 0 : i64, tpu.core_type = #tpu.core_type<tc>, window_params = [{transform_indices = @transform_0, window_bounds = array<i64: 8, 1024>}, {pipeline_mode = #tpu.pipeline_mode<synchronous>, transform_indices = @transform_1, window_bounds = array<i64: 1024, 128>}, {pipeline_mode = #tpu.pipeline_mode<synchronous>, transform_indices = @transform_2, window_bounds = array<i64: 1, 128>}, {pipeline_mode = #tpu.pipeline_mode<synchronous>, transform_indices = @transform_3, window_bounds = array<i64: 128, 128>}, {pipeline_mode = #tpu.pipeline_mode<synchronous>, transform_indices = @transform_4, window_bounds = array<i64: 1, 128>}, {pipeline_mode = #tpu.pipeline_mode<synchronous>, transform_indices = @transform_5, window_bounds = array<i64: 128, 1024>}, {pipeline_mode = #tpu.pipeline_mode<synchronous>, transform_indices = @transform_6, window_bounds = array<i64: 1, 1024>}, {transform_indices = @transform_7, window_bounds = array<i64: 8, 1024>}]} {
    %c0 = arith.constant 0 : index
    %c0_0 = arith.constant 0 : index
    %0 = vector.load %arg3[%c0, %c0_0] : memref<1x128xf32, #tpu.memory_space<vmem>>, vector<1x128xf32>
    %c0_1 = arith.constant 0 : index
    %c0_2 = arith.constant 0 : index
    %1 = vector.load %arg5[%c0_1, %c0_2] : memref<1x128xf32, #tpu.memory_space<vmem>>, vector<1x128xf32>
    %c0_3 = arith.constant 0 : index
    %c0_4 = arith.constant 0 : index
    %2 = vector.load %arg7[%c0_3, %c0_4] : memref<1x1024xf32, #tpu.memory_space<vmem>>, vector<1x1024xf32>
    %c0_5 = arith.constant 0 : index
    %c0_6 = arith.constant 0 : index
    %3 = vector.load %arg1[%c0_5, %c0_6] : memref<8x1024xf32, #tpu.memory_space<vmem>>, vector<8x1024xf32>
    %4 = arith.truncf %3 : vector<8x1024xf32> to vector<8x1024xbf16>
    %c0_7 = arith.constant 0 : index
    %c0_8 = arith.constant 0 : index
    %5 = vector.load %arg2[%c0_7, %c0_8] : memref<1024x128xbf16, #tpu.memory_space<vmem>>, vector<1024x128xbf16>
    %cst = arith.constant dense<0.000000e+00> : vector<8x128xf32>
    %6 = tpu.matmul %4, %5, %cst {dimension_numbers = #tpu.dot_dimension_numbers<[1], [0], [0], [1], [0, 0, 1, 1], [], []>} : vector<8x1024xbf16>, vector<1024x128xbf16>, vector<8x128xf32> -> vector<8x128xf32>
    %7 = vector.broadcast %0 : vector<1x128xf32> to vector<8x128xf32>
    %8 = arith.addf %6, %7 : vector<8x128xf32>
    %cst_9 = arith.constant 0.000000e+00 : f32
    %9 = vector.broadcast %cst_9 : f32 to vector<8x128xf32>
    %10 = arith.maximumf %8, %9 : vector<8x128xf32>
    %11 = arith.truncf %10 : vector<8x128xf32> to vector<8x128xbf16>
    %c0_10 = arith.constant 0 : index
    %c0_11 = arith.constant 0 : index
    %12 = vector.load %arg4[%c0_10, %c0_11] : memref<128x128xbf16, #tpu.memory_space<vmem>>, vector<128x128xbf16>
    %cst_12 = arith.constant dense<0.000000e+00> : vector<8x128xf32>
    %13 = tpu.matmul %11, %12, %cst_12 {dimension_numbers = #tpu.dot_dimension_numbers<[1], [0], [0], [1], [0, 0, 1, 1], [], []>} : vector<8x128xbf16>, vector<128x128xbf16>, vector<8x128xf32> -> vector<8x128xf32>
    %14 = vector.broadcast %1 : vector<1x128xf32> to vector<8x128xf32>
    %15 = arith.addf %13, %14 : vector<8x128xf32>
    %cst_13 = arith.constant 0.000000e+00 : f32
    %16 = vector.broadcast %cst_13 : f32 to vector<8x128xf32>
    %17 = arith.maximumf %15, %16 : vector<8x128xf32>
    %18 = arith.truncf %17 : vector<8x128xf32> to vector<8x128xbf16>
    %c0_14 = arith.constant 0 : index
    %c0_15 = arith.constant 0 : index
    %19 = vector.load %arg6[%c0_14, %c0_15] : memref<128x1024xbf16, #tpu.memory_space<vmem>>, vector<128x1024xbf16>
    %cst_16 = arith.constant dense<0.000000e+00> : vector<8x1024xf32>
    %20 = tpu.matmul %18, %19, %cst_16 {dimension_numbers = #tpu.dot_dimension_numbers<[1], [0], [0], [1], [0, 0, 1, 1], [], []>} : vector<8x128xbf16>, vector<128x1024xbf16>, vector<8x1024xf32> -> vector<8x1024xf32>
    %21 = vector.broadcast %2 : vector<1x1024xf32> to vector<8x1024xf32>
    %22 = arith.addf %20, %21 : vector<8x1024xf32>
    %c0_17 = arith.constant 0 : index
    %c0_18 = arith.constant 0 : index
    %23 = vector.load %arg8[%c0_17, %c0_18] : memref<8x1024xf32, #tpu.memory_space<vmem>>, vector<8x1024xf32>
    tpu.vector_store %arg8[%c0_17, %c0_18], %22 {strides = array<i32>} : memref<8x1024xf32, #tpu.memory_space<vmem>>, vector<8x1024xf32>,
    return
  }
  func.func @transform_0(%arg0: i32) -> (i32, i32) {
    %c0_i32 = arith.constant 0 : i32
    %c0_i32_0 = arith.constant 0 : i32
    return %arg0, %c0_i32 : i32, i32
  }
  func.func @transform_1(%arg0: i32) -> (i32, i32) {
    %c0_i32 = arith.constant 0 : i32
    %c0_i32_0 = arith.constant 0 : i32
    %c0_i32_1 = arith.constant 0 : i32
    return %c0_i32, %c0_i32_0 : i32, i32
  }
  func.func @transform_2(%arg0: i32) -> (i32, i32) {
    %c0_i32 = arith.constant 0 : i32
    %c0_i32_0 = arith.constant 0 : i32
    %c0_i32_1 = arith.constant 0 : i32
    return %c0_i32, %c0_i32_0 : i32, i32
  }
  func.func @transform_3(%arg0: i32) -> (i32, i32) {
    %c0_i32 = arith.constant 0 : i32
    %c0_i32_0 = arith.constant 0 : i32
    %c0_i32_1 = arith.constant 0 : i32
    return %c0_i32, %c0_i32_0 : i32, i32
  }
  func.func @transform_4(%arg0: i32) -> (i32, i32) {
    %c0_i32 = arith.constant 0 : i32
    %c0_i32_0 = arith.constant 0 : i32
    %c0_i32_1 = arith.constant 0 : i32
    return %c0_i32, %c0_i32_0 : i32, i32
  }
  func.func @transform_5(%arg0: i32) -> (i32, i32) {
    %c0_i32 = arith.constant 0 : i32
    %c0_i32_0 = arith.constant 0 : i32
    %c0_i32_1 = arith.constant 0 : i32
    return %c0_i32, %c0_i32_0 : i32, i32
  }
  func.func @transform_6(%arg0: i32) -> (i32, i32) {
    %c0_i32 = arith.constant 0 : i32
    %c0_i32_0 = arith.constant 0 : i32
    %c0_i32_1 = arith.constant 0 : i32
    return %c0_i32, %c0_i32_0 : i32, i32
  }
  func.func @transform_7(%arg0: i32) -> (i32, i32) {
    %c0_i32 = arith.constant 0 : i32
    %c0_i32_0 = arith.constant 0 : i32
    return %arg0, %c0_i32 : i32, i32
  }
}

</mosaic_0001>

<llo_original>
// kernel: tpu_custom_call.1
$region0: #{tpu_custom_call.1}
  #allocation0 [shape = 'u32[]', space=smem, size = 0x4, offset = 0x4, fixed_abs, tag = 'smem constant byte address 0x4 - core index']
  #allocation1 [shape = 'u32[144,128]{1,0:T(1,128)}', space=vmem, size = 0x12000, scoped, tag = 'internal scratch']
  %s0 = inlined_call_operand.hbm [shape: f32[8,1024], index: 0, kind: input, shape index: {}]
  %s1 = inlined_call_operand.hbm [shape: bf16[1024,128], index: 1, kind: input, shape index: {}]
  %s2 = inlined_call_operand.vmem [shape: f32[1,128], index: 2, kind: input, shape index: {}]
  %s3 = inlined_call_operand.hbm [shape: bf16[128,128], index: 3, kind: input, shape index: {}]
  %s4 = inlined_call_operand.vmem [shape: f32[1,128], index: 4, kind: input, shape index: {}]
  %s5 = inlined_call_operand.hbm [shape: bf16[128,1024], index: 5, kind: input, shape index: {}]
  %s6 = inlined_call_operand.vmem [shape: f32[1,1024], index: 6, kind: input, shape index: {}]
  %s7 = inlined_call_operand.hbm [shape: f32[8,1024], index: 7, kind: output, shape index: {}]
  %s8 = sld [smem:[#allocation0]]
  $region54: #{tpu_custom_call.1} parent=0
    _
  %s10 = ssub.s32 1, %s8
  %s11 = scalar_select 0, %s10, %s8
  $region1: #{tpu_custom_call.1} parent=0
    #allocation2 [shape = 'u8[32768]{0}', space=vmem, size = 0x8000, scoped, tag = 'input window, operand 0, single buffered']
    #allocation3 [shape = 's32[1]{0}', space=sflag, size = 0x4, scoped, tag = 'scoped memory for tpu_custom_call.1']
    #allocation4 [shape = 's32[1]{0}', space=sflag, size = 0x4, scoped, tag = 'scoped memory for tpu_custom_call.1']
    #allocation5 [shape = 'u8[262144]{0}', space=vmem, size = 0x40000, scoped, tag = 'input window, operand 1, single buffered']
    #allocation6 [shape = 's32[1]{0}', space=sflag, size = 0x4, scoped, tag = 'scoped memory for tpu_custom_call.1']
    #allocation7 [shape = 'u8[32768]{0}', space=vmem, size = 0x8000, scoped, tag = 'input window, operand 3, single buffered']
    #allocation8 [shape = 'u8[262144]{0}', space=vmem, size = 0x40000, scoped, tag = 'input window, operand 5, single buffered']
    #allocation9 [shape = 's32[1]{0}', space=sflag, size = 0x4, scoped, tag = 'scoped memory for tpu_custom_call.1']
    #allocation10 [shape = 'u8[32768]{0}', space=vmem, size = 0x8000, scoped, tag = 'output window, operand 0, single buffered']
    %12 = vsyncpa [#allocation3], 0
    %13 = vsyncpa [#allocation6], 0
    %14 = vsyncpa [#allocation9], 0
    %15 = vsyncpa [#allocation4], 0
    // Predicated region
    $region2: #{tpu_custom_call.1} parent=1 // pred_check
      _
    $region3: #{tpu_custom_call.1} parent=1 // pred_check_branch
      %17 = sbr.rel (0) target = $region5
    $region4: #{tpu_custom_call.1} parent=1 // pred_region
      %s19 = ssub.s32 1024, 1024
      %20 = vsyncadd [#allocation3], %s19
      %s22 = sshll.u32 [#allocation2], 4
      %s23 = int_to_ptr.vmem [resolvable:$true] %s22
      %25 = dma.hbm_to_vmem [thread:$0]  %s0, 1024, %s23, [#allocation3]
    $region5: #{tpu_custom_call.1} parent=1 // pred_fallthru
      _
    // Predicated region
    $region6: #{tpu_custom_call.1} parent=1 // pred_check
      _
    $region7: #{tpu_custom_call.1} parent=1 // pred_check_branch
      %27 = sbr.rel (0) target = $region9
    $region8: #{tpu_custom_call.1} parent=1 // pred_region
      %s29 = ssub.s32 8192, 8192
      %30 = vsyncadd [#allocation6], %s29
      %s31 = sshll.u32 [#allocation5], 4
      %s32 = int_to_ptr.vmem [resolvable:$true] %s31
      %37 = dma.hbm_to_vmem [thread:$0]  %s1, 8192, %s32, [#allocation6], 64, 64, 4
    $region9: #{tpu_custom_call.1} parent=1 // pred_fallthru
      _
    // Predicated region
    $region10: #{tpu_custom_call.1} parent=1 // pred_check
      _
    $region11: #{tpu_custom_call.1} parent=1 // pred_check_branch
      %39 = sbr.rel (0) target = $region13
    $region12: #{tpu_custom_call.1} parent=1 // pred_region
      _
    $region13: #{tpu_custom_call.1} parent=1 // pred_fallthru
      _
    // Predicated region
    $region14: #{tpu_custom_call.1} parent=1 // pred_check
      _
    $region15: #{tpu_custom_call.1} parent=1 // pred_check_branch
      %41 = sbr.rel (0) target = $region17
    $region16: #{tpu_custom_call.1} parent=1 // pred_region
      %s43 = ssub.s32 1024, 1024
      %44 = vsyncadd [#allocation6], %s43
      %s45 = sshll.u32 [#allocation7], 4
      %s46 = int_to_ptr.vmem [resolvable:$true] %s45
      %51 = dma.hbm_to_vmem [thread:$0]  %s3, 1024, %s46, [#allocation6], 64, 64, 4
    $region17: #{tpu_custom_call.1} parent=1 // pred_fallthru
      _
    // Predicated region
    $region18: #{tpu_custom_call.1} parent=1 // pred_check
      _
    $region19: #{tpu_custom_call.1} parent=1 // pred_check_branch
      %53 = sbr.rel (0) target = $region21
    $region20: #{tpu_custom_call.1} parent=1 // pred_region
      _
    $region21: #{tpu_custom_call.1} parent=1 // pred_fallthru
      _
    // Predicated region
    $region22: #{tpu_custom_call.1} parent=1 // pred_check
      _
    $region23: #{tpu_custom_call.1} parent=1 // pred_check_branch
      %55 = sbr.rel (0) target = $region25
    $region24: #{tpu_custom_call.1} parent=1 // pred_region
      %s57 = ssub.s32 8192, 8192
      %58 = vsyncadd [#allocation9], %s57
      %s59 = sshll.u32 [#allocation8], 4
      %s60 = int_to_ptr.vmem [resolvable:$true] %s59
      %65 = dma.hbm_to_vmem [thread:$0]  %s5, 8192, %s60, [#allocation9], 512, 512, 32
    $region25: #{tpu_custom_call.1} parent=1 // pred_fallthru
      _
    // Predicated region
    $region26: #{tpu_custom_call.1} parent=1 // pred_check
      _
    $region27: #{tpu_custom_call.1} parent=1 // pred_check_branch
      %67 = sbr.rel (0) target = $region29
    $region28: #{tpu_custom_call.1} parent=1 // pred_region
      _
    $region29: #{tpu_custom_call.1} parent=1 // pred_fallthru
      _
    // Predicated region
    $region30: #{tpu_custom_call.1} parent=1 // pred_check
      _
    $region31: #{tpu_custom_call.1} parent=1 // pred_check_branch
      %69 = sbr.rel (0) target = $region33
    $region32: #{tpu_custom_call.1} parent=1 // pred_region
      %70 = dma.done [#allocation3], 1024
    $region33: #{tpu_custom_call.1} parent=1 // pred_fallthru
      _
    // Predicated region
    $region34: #{tpu_custom_call.1} parent=1 // pred_check
      _
    $region35: #{tpu_custom_call.1} parent=1 // pred_check_branch
      %72 = sbr.rel (0) target = $region37
    $region36: #{tpu_custom_call.1} parent=1 // pred_region
      %73 = dma.done [#allocation6], 8192
    $region37: #{tpu_custom_call.1} parent=1 // pred_fallthru
      _
    // Predicated region
    $region38: #{tpu_custom_call.1} parent=1 // pred_check
      _
    $region39: #{tpu_custom_call.1} parent=1 // pred_check_branch
      %75 = sbr.rel (0) target = $region41
    $region40: #{tpu_custom_call.1} parent=1 // pred_region
      %76 = dma.done [#allocation6], 1024
    $region41: #{tpu_custom_call.1} parent=1 // pred_fallthru
      _
    // Predicated region
    $region42: #{tpu_custom_call.1} parent=1 // pred_check
      _
    $region43: #{tpu_custom_call.1} parent=1 // pred_check_branch
      %78 = sbr.rel (0) target = $region45
    $region44: #{tpu_custom_call.1} parent=1 // pred_region
      %79 = dma.done [#allocation9], 8192
    $region45: #{tpu_custom_call.1} parent=1 // pred_fallthru
      _
    %v81 = vld [vmem:[%s2] sm:$0x1]
    %v82 = vld [vmem:[%s4] sm:$0x1]
    %v83 = vld [vmem:[%s6] sm:$0xff]
    %v84 = vld [vmem:[#allocation2] sm:$0xff]
    %v85 = vld [vmem:[#allocation2 + $0x8] sm:$0xff]
    %v86 = vld [vmem:[#allocation2 + $0x10] sm:$0xff]
    %v87 = vld [vmem:[#allocation2 + $0x18] sm:$0xff]
    %v88 = vld [vmem:[#allocation2 + $0x20] sm:$0xff]
    %v89 = vld [vmem:[#allocation2 + $0x28] sm:$0xff]
    %v90 = vld [vmem:[#allocation2 + $0x30] sm:$0xff]
    %v91 = vld [vmem:[#allocation2 + $0x38] sm:$0xff]
    %v92 = vpack.c.bf16 %v84, %v84
    %v93 = vpack.c.bf16 %v85, %v85
    %v94 = vpack.c.bf16 %v86, %v86
    %v95 = vpack.c.bf16 %v87, %v87
    %v96 = vpack.c.bf16 %v88, %v88
    %v97 = vpack.c.bf16 %v89, %v89
    %v98 = vpack.c.bf16 %v90, %v90
    %v99 = vpack.c.bf16 %v91, %v91
    %v100 = vld [vmem:[#allocation5] sm:$0xf]
    %v101 = vld [vmem:[#allocation5 + $0x4] sm:$0xf]
    %v102 = vld [vmem:[#allocation5 + $0x8] sm:$0xf]
    %v103 = vld [vmem:[#allocation5 + $0xc] sm:$0xf]
    %v104 = vld [vmem:[#allocation5 + $0x10] sm:$0xf]
    %v105 = vld [vmem:[#allocation5 + $0x14] sm:$0xf]
    %v106 = vld [vmem:[#allocation5 + $0x18] sm:$0xf]
    %v107 = vld [vmem:[#allocation5 + $0x1c] sm:$0xf]
    %v108 = vld [vmem:[#allocation5 + $0x20] sm:$0xf]
    %v109 = vld [vmem:[#allocation5 + $0x24] sm:$0xf]
    %v110 = vld [vmem:[#allocation5 + $0x28] sm:$0xf]
    %v111 = vld [vmem:[#allocation5 + $0x2c] sm:$0xf]
    %v112 = vld [vmem:[#allocation5 + $0x30] sm:$0xf]
    %v113 = vld [vmem:[#allocation5 + $0x34] sm:$0xf]
    %v114 = vld [vmem:[#allocation5 + $0x38] sm:$0xf]
    %v115 = vld [vmem:[#allocation5 + $0x3c] sm:$0xf]
    %v116 = vld [vmem:[#allocation5 + $0x40] sm:$0xf]
    %v117 = vld [vmem:[#allocation5 + $0x44] sm:$0xf]
    %v118 = vld [vmem:[#allocation5 + $0x48] sm:$0xf]
    %v119 = vld [vmem:[#allocation5 + $0x4c] sm:$0xf]
    %v120 = vld [vmem:[#allocation5 + $0x50] sm:$0xf]
    %v121 = vld [vmem:[#allocation5 + $0x54] sm:$0xf]
    %v122 = vld [vmem:[#allocation5 + $0x58] sm:$0xf]
    %v123 = vld [vmem:[#allocation5 + $0x5c] sm:$0xf]
    %v124 = vld [vmem:[#allocation5 + $0x60] sm:$0xf]
    %v125 = vld [vmem:[#allocation5 + $0x64] sm:$0xf]
    %v126 = vld [vmem:[#allocation5 + $0x68] sm:$0xf]
    %v127 = vld [vmem:[#allocation5 + $0x6c] sm:$0xf]
    %v128 = vld [vmem:[#allocation5 + $0x70] sm:$0xf]
    %v129 = vld [vmem:[#allocation5 + $0x74] sm:$0xf]
    %v130 = vld [vmem:[#allocation5 + $0x78] sm:$0xf]
    %v131 = vld [vmem:[#allocation5 + $0x7c] sm:$0xf]
    %v132 = vld [vmem:[#allocation5 + $0x80] sm:$0xf]
    %v133 = vld [vmem:[#allocation5 + $0x84] sm:$0xf]
    %v134 = vld [vmem:[#allocation5 + $0x88] sm:$0xf]
    %v135 = vld [vmem:[#allocation5 + $0x8c] sm:$0xf]
    %v136 = vld [vmem:[#allocation5 + $0x90] sm:$0xf]
    %v137 = vld [vmem:[#allocation5 + $0x94] sm:$0xf]
    %v138 = vld [vmem:[#allocation5 + $0x98] sm:$0xf]
    %v139 = vld [vmem:[#allocation5 + $0x9c] sm:$0xf]
    %v140 = vld [vmem:[#allocation5 + $0xa0] sm:$0xf]
    %v141 = vld [vmem:[#allocation5 + $0xa4] sm:$0xf]
    %v142 = vld [vmem:[#allocation5 + $0xa8] sm:$0xf]
    %v143 = vld [vmem:[#allocation5 + $0xac] sm:$0xf]
    %v144 = vld [vmem:[#allocation5 + $0xb0] sm:$0xf]
    %v145 = vld [vmem:[#allocation5 + $0xb4] sm:$0xf]
    %v146 = vld [vmem:[#allocation5 + $0xb8] sm:$0xf]
    %v147 = vld [vmem:[#allocation5 + $0xbc] sm:$0xf]
    %v148 = vld [vmem:[#allocation5 + $0xc0] sm:$0xf]
    %v149 = vld [vmem:[#allocation5 + $0xc4] sm:$0xf]
    %v150 = vld [vmem:[#allocation5 + $0xc8] sm:$0xf]
    %v151 = vld [vmem:[#allocation5 + $0xcc] sm:$0xf]
    %v152 = vld [vmem:[#allocation5 + $0xd0] sm:$0xf]
    %v153 = vld [vmem:[#allocation5 + $0xd4] sm:$0xf]
    %v154 = vld [vmem:[#allocation5 + $0xd8] sm:$0xf]
    %v155 = vld [vmem:[#allocation5 + $0xdc] sm:$0xf]
    %v156 = vld [vmem:[#allocation5 + $0xe0] sm:$0xf]
    %v157 = vld [vmem:[#allocation5 + $0xe4] sm:$0xf]
    %v158 = vld [vmem:[#allocation5 + $0xe8] sm:$0xf]
    %v159 = vld [vmem:[#allocation5 + $0xec] sm:$0xf]
    %v160 = vld [vmem:[#allocation5 + $0xf0] sm:$0xf]
    %v161 = vld [vmem:[#allocation5 + $0xf4] sm:$0xf]
    %v162 = vld [vmem:[#allocation5 + $0xf8] sm:$0xf]
    %v163 = vld [vmem:[#allocation5 + $0xfc] sm:$0xf]
    %v164 = vld [vmem:[#allocation5 + $0x100] sm:$0xf]
    %v165 = vld [vmem:[#allocation5 + $0x104] sm:$0xf]
    %v166 = vld [vmem:[#allocation5 + $0x108] sm:$0xf]
    %v167 = vld [vmem:[#allocation5 + $0x10c] sm:$0xf]
    %v168 = vld [vmem:[#allocation5 + $0x110] sm:$0xf]
    %v169 = vld [vmem:[#allocation5 + $0x114] sm:$0xf]
    %v170 = vld [vmem:[#allocation5 + $0x118] sm:$0xf]
    %v171 = vld [vmem:[#allocation5 + $0x11c] sm:$0xf]
    %v172 = vld [vmem:[#allocation5 + $0x120] sm:$0xf]
    %v173 = vld [vmem:[#allocation5 + $0x124] sm:$0xf]
    %v174 = vld [vmem:[#allocation5 + $0x128] sm:$0xf]
    %v175 = vld [vmem:[#allocation5 + $0x12c] sm:$0xf]
    %v176 = vld [vmem:[#allocation5 + $0x130] sm:$0xf]
    %v177 = vld [vmem:[#allocation5 + $0x134] sm:$0xf]
    %v178 = vld [vmem:[#allocation5 + $0x138] sm:$0xf]
    %v179 = vld [vmem:[#allocation5 + $0x13c] sm:$0xf]
    %v180 = vld [vmem:[#allocation5 + $0x140] sm:$0xf]
    %v181 = vld [vmem:[#allocation5 + $0x144] sm:$0xf]
    %v182 = vld [vmem:[#allocation5 + $0x148] sm:$0xf]
    %v183 = vld [vmem:[#allocation5 + $0x14c] sm:$0xf]
    %v184 = vld [vmem:[#allocation5 + $0x150] sm:$0xf]
    %v185 = vld [vmem:[#allocation5 + $0x154] sm:$0xf]
    %v186 = vld [vmem:[#allocation5 + $0x158] sm:$0xf]
    %v187 = vld [vmem:[#allocation5 + $0x15c] sm:$0xf]
    %v188 = vld [vmem:[#allocation5 + $0x160] sm:$0xf]
    %v189 = vld [vmem:[#allocation5 + $0x164] sm:$0xf]
    %v190 = vld [vmem:[#allocation5 + $0x168] sm:$0xf]
    %v191 = vld [vmem:[#allocation5 + $0x16c] sm:$0xf]
    %v192 = vld [vmem:[#allocation5 + $0x170] sm:$0xf]
    %v193 = vld [vmem:[#allocation5 + $0x174] sm:$0xf]
    %v194 = vld [vmem:[#allocation5 + $0x178] sm:$0xf]
    %v195 = vld [vmem:[#allocation5 + $0x17c] sm:$0xf]
    %v196 = vld [vmem:[#allocation5 + $0x180] sm:$0xf]
    %v197 = vld [vmem:[#allocation5 + $0x184] sm:$0xf]
    %v198 = vld [vmem:[#allocation5 + $0x188] sm:$0xf]
    %v199 = vld [vmem:[#allocation5 + $0x18c] sm:$0xf]
    %v200 = vld [vmem:[#allocation5 + $0x190] sm:$0xf]
    %v201 = vld [vmem:[#allocation5 + $0x194] sm:$0xf]
    %v202 = vld [vmem:[#allocation5 + $0x198] sm:$0xf]
    %v203 = vld [vmem:[#allocation5 + $0x19c] sm:$0xf]
    %v204 = vld [vmem:[#allocation5 + $0x1a0] sm:$0xf]
    %v205 = vld [vmem:[#allocation5 + $0x1a4] sm:$0xf]
    %v206 = vld [vmem:[#allocation5 + $0x1a8] sm:$0xf]
    %v207 = vld [vmem:[#allocation5 + $0x1ac] sm:$0xf]
    %v208 = vld [vmem:[#allocation5 + $0x1b0] sm:$0xf]
    %v209 = vld [vmem:[#allocation5 + $0x1b4] sm:$0xf]
    %v210 = vld [vmem:[#allocation5 + $0x1b8] sm:$0xf]
    %v211 = vld [vmem:[#allocation5 + $0x1bc] sm:$0xf]
    %v212 = vld [vmem:[#allocation5 + $0x1c0] sm:$0xf]
    %v213 = vld [vmem:[#allocation5 + $0x1c4] sm:$0xf]
    %v214 = vld [vmem:[#allocation5 + $0x1c8] sm:$0xf]
    %v215 = vld [vmem:[#allocation5 + $0x1cc] sm:$0xf]
    %v216 = vld [vmem:[#allocation5 + $0x1d0] sm:$0xf]
    %v217 = vld [vmem:[#allocation5 + $0x1d4] sm:$0xf]
    %v218 = vld [vmem:[#allocation5 + $0x1d8] sm:$0xf]
    %v219 = vld [vmem:[#allocation5 + $0x1dc] sm:$0xf]
    %v220 = vld [vmem:[#allocation5 + $0x1e0] sm:$0xf]
    %v221 = vld [vmem:[#allocation5 + $0x1e4] sm:$0xf]
    %v222 = vld [vmem:[#allocation5 + $0x1e8] sm:$0xf]
    %v223 = vld [vmem:[#allocation5 + $0x1ec] sm:$0xf]
    %v224 = vld [vmem:[#allocation5 + $0x1f0] sm:$0xf]
    %v225 = vld [vmem:[#allocation5 + $0x1f4] sm:$0xf]
    %v226 = vld [vmem:[#allocation5 + $0x1f8] sm:$0xf]
    %v227 = vld [vmem:[#allocation5 + $0x1fc] sm:$0xf]
    %v229 = vlaneseq
    %v230 = vshrl.u32 %v229, 7
    %v231 = vsub.s32 0, %v230
    %v232 = vrot.slane %v81, %v231
    %v362 = vunpack.c.l.b16 %v100
    %v363 = vunpack.c.l.b16 %v101
    %v364 = vunpack.c.l.b16 %v102
    %v365 = vunpack.c.l.b16 %v103
    %v366 = vunpack.c.l.b16 %v104
    %v367 = vunpack.c.l.b16 %v105
    %v368 = vunpack.c.l.b16 %v106
    %v369 = vunpack.c.l.b16 %v107
    %v370 = vunpack.c.l.b16 %v108
    %v371 = vunpack.c.l.b16 %v109
    %v372 = vunpack.c.l.b16 %v110
    %v373 = vunpack.c.l.b16 %v111
    %v374 = vunpack.c.l.b16 %v112
    %v375 = vunpack.c.l.b16 %v113
    %v376 = vunpack.c.l.b16 %v114
    %v377 = vunpack.c.l.b16 %v115
    %v378 = vunpack.c.l.b16 %v116
    %v379 = vunpack.c.l.b16 %v117
    %v380 = vunpack.c.l.b16 %v118
    %v381 = vunpack.c.l.b16 %v119
    %v382 = vunpack.c.l.b16 %v120
    %v383 = vunpack.c.l.b16 %v121
    %v384 = vunpack.c.l.b16 %v122
    %v385 = vunpack.c.l.b16 %v123
    %v386 = vunpack.c.l.b16 %v124
    %v387 = vunpack.c.l.b16 %v125
    %v388 = vunpack.c.l.b16 %v126
    %v389 = vunpack.c.l.b16 %v127
    %v390 = vunpack.c.l.b16 %v128
    %v391 = vunpack.c.l.b16 %v129
    %v392 = vunpack.c.l.b16 %v130
    %v393 = vunpack.c.l.b16 %v131
    %v394 = vunpack.c.l.b16 %v132
    %v395 = vunpack.c.l.b16 %v133
    %v396 = vunpack.c.l.b16 %v134
    %v397 = vunpack.c.l.b16 %v135
    %v398 = vunpack.c.l.b16 %v136
    %v399 = vunpack.c.l.b16 %v137
    %v400 = vunpack.c.l.b16 %v138
    %v401 = vunpack.c.l.b16 %v139
    %v402 = vunpack.c.l.b16 %v140
    %v403 = vunpack.c.l.b16 %v141
    %v404 = vunpack.c.l.b16 %v142
    %v405 = vunpack.c.l.b16 %v143
    %v406 = vunpack.c.l.b16 %v144
    %v407 = vunpack.c.l.b16 %v145
    %v408 = vunpack.c.l.b16 %v146
    %v409 = vunpack.c.l.b16 %v147
    %v410 = vunpack.c.l.b16 %v148
    %v411 = vunpack.c.l.b16 %v149
    %v412 = vunpack.c.l.b16 %v150
    %v413 = vunpack.c.l.b16 %v151
    %v414 = vunpack.c.l.b16 %v152
    %v415 = vunpack.c.l.b16 %v153
    %v416 = vunpack.c.l.b16 %v154
    %v417 = vunpack.c.l.b16 %v155
    %v418 = vunpack.c.l.b16 %v156
    %v419 = vunpack.c.l.b16 %v157
    %v420 = vunpack.c.l.b16 %v158
    %v421 = vunpack.c.l.b16 %v159
    %v422 = vunpack.c.l.b16 %v160
    %v423 = vunpack.c.l.b16 %v161
    %v424 = vunpack.c.l.b16 %v162
    %v425 = vunpack.c.l.b16 %v163
    %v426 = vunpack.c.l.b16 %v164
    %v427 = vunpack.c.l.b16 %v165
    %v428 = vunpack.c.l.b16 %v166
    %v429 = vunpack.c.l.b16 %v167
    %v430 = vunpack.c.l.b16 %v168
    %v431 = vunpack.c.l.b16 %v169
    %v432 = vunpack.c.l.b16 %v170
    %v433 = vunpack.c.l.b16 %v171
    %v434 = vunpack.c.l.b16 %v172
    %v435 = vunpack.c.l.b16 %v173
    %v436 = vunpack.c.l.b16 %v174
    %v437 = vunpack.c.l.b16 %v175
    %v438 = vunpack.c.l.b16 %v176
    %v439 = vunpack.c.l.b16 %v177
    %v440 = vunpack.c.l.b16 %v178
    %v441 = vunpack.c.l.b16 %v179
    %v442 = vunpack.c.l.b16 %v180
    %v443 = vunpack.c.l.b16 %v181
    %v444 = vunpack.c.l.b16 %v182
    %v445 = vunpack.c.l.b16 %v183
    %v446 = vunpack.c.l.b16 %v184
    %v447 = vunpack.c.l.b16 %v185
    %v448 = vunpack.c.l.b16 %v186
    %v449 = vunpack.c.l.b16 %v187
    %v450 = vunpack.c.l.b16 %v188
    %v451 = vunpack.c.l.b16 %v189
    %v452 = vunpack.c.l.b16 %v190
    %v453 = vunpack.c.l.b16 %v191
    %v454 = vunpack.c.l.b16 %v192
    %v455 = vunpack.c.l.b16 %v193
    %v456 = vunpack.c.l.b16 %v194
    %v457 = vunpack.c.l.b16 %v195
    %v458 = vunpack.c.l.b16 %v196
    %v459 = vunpack.c.l.b16 %v197
    %v460 = vunpack.c.l.b16 %v198
    %v461 = vunpack.c.l.b16 %v199
    %v462 = vunpack.c.l.b16 %v200
    %v463 = vunpack.c.l.b16 %v201
    %v464 = vunpack.c.l.b16 %v202
    %v465 = vunpack.c.l.b16 %v203
    %v466 = vunpack.c.l.b16 %v204
    %v467 = vunpack.c.l.b16 %v205
    %v468 = vunpack.c.l.b16 %v206
    %v469 = vunpack.c.l.b16 %v207
    %v470 = vunpack.c.l.b16 %v208
    %v471 = vunpack.c.l.b16 %v209
    %v472 = vunpack.c.l.b16 %v210
    %v473 = vunpack.c.l.b16 %v211
    %v474 = vunpack.c.l.b16 %v212
    %v475 = vunpack.c.l.b16 %v213
    %v476 = vunpack.c.l.b16 %v214
    %v477 = vunpack.c.l.b16 %v215
    %v478 = vunpack.c.l.b16 %v216
    %v479 = vunpack.c.l.b16 %v217
    %v480 = vunpack.c.l.b16 %v218
    %v481 = vunpack.c.l.b16 %v219
    %v482 = vunpack.c.l.b16 %v220
    %v483 = vunpack.c.l.b16 %v221
    %v484 = vunpack.c.l.b16 %v222
    %v485 = vunpack.c.l.b16 %v223
    %v486 = vunpack.c.l.b16 %v224
    %v487 = vunpack.c.l.b16 %v225
    %v488 = vunpack.c.l.b16 %v226
    %v489 = vunpack.c.l.b16 %v227
    %v490 = vpack.c.b16 %v363, %v362
    %v491 = vpack.c.b16 %v365, %v364
    %v492 = vpack.c.b16 %v367, %v366
    %v493 = vpack.c.b16 %v369, %v368
    %v494 = vpack.c.b16 %v371, %v370
    %v495 = vpack.c.b16 %v373, %v372
    %v496 = vpack.c.b16 %v375, %v374
    %v497 = vpack.c.b16 %v377, %v376
    %v498 = vpack.c.b16 %v379, %v378
    %v499 = vpack.c.b16 %v381, %v380
    %v500 = vpack.c.b16 %v383, %v382
    %v501 = vpack.c.b16 %v385, %v384
    %v502 = vpack.c.b16 %v387, %v386
    %v503 = vpack.c.b16 %v389, %v388
    %v504 = vpack.c.b16 %v391, %v390
    %v505 = vpack.c.b16 %v393, %v392
    %v506 = vpack.c.b16 %v395, %v394
    %v507 = vpack.c.b16 %v397, %v396
    %v508 = vpack.c.b16 %v399, %v398
    %v509 = vpack.c.b16 %v401, %v400
    %v510 = vpack.c.b16 %v403, %v402
    %v511 = vpack.c.b16 %v405, %v404
    %v512 = vpack.c.b16 %v407, %v406
    %v513 = vpack.c.b16 %v409, %v408
    %v514 = vpack.c.b16 %v411, %v410
    %v515 = vpack.c.b16 %v413, %v412
    %v516 = vpack.c.b16 %v415, %v414
    %v517 = vpack.c.b16 %v417, %v416
    %v518 = vpack.c.b16 %v419, %v418
    %v519 = vpack.c.b16 %v421, %v420
    %v520 = vpack.c.b16 %v423, %v422
    %v521 = vpack.c.b16 %v425, %v424
    %v522 = vpack.c.b16 %v427, %v426
    %v523 = vpack.c.b16 %v429, %v428
    %v524 = vpack.c.b16 %v431, %v430
    %v525 = vpack.c.b16 %v433, %v432
    %v526 = vpack.c.b16 %v435, %v434
    %v527 = vpack.c.b16 %v437, %v436
    %v528 = vpack.c.b16 %v439, %v438
    %v529 = vpack.c.b16 %v441, %v440
    %v530 = vpack.c.b16 %v443, %v442
    %v531 = vpack.c.b16 %v445, %v444
    %v532 = vpack.c.b16 %v447, %v446
    %v533 = vpack.c.b16 %v449, %v448
    %v534 = vpack.c.b16 %v451, %v450
    %v535 = vpack.c.b16 %v453, %v452
    %v536 = vpack.c.b16 %v455, %v454
    %v537 = vpack.c.b16 %v457, %v456
    %v538 = vpack.c.b16 %v459, %v458
    %v539 = vpack.c.b16 %v461, %v460
    %v540 = vpack.c.b16 %v463, %v462
    %v541 = vpack.c.b16 %v465, %v464
    %v542 = vpack.c.b16 %v467, %v466
    %v543 = vpack.c.b16 %v469, %v468
    %v544 = vpack.c.b16 %v471, %v470
    %v545 = vpack.c.b16 %v473, %v472
    %v546 = vpack.c.b16 %v475, %v474
    %v547 = vpack.c.b16 %v477, %v476
    %v548 = vpack.c.b16 %v479, %v478
    %v549 = vpack.c.b16 %v481, %v480
    %v550 = vpack.c.b16 %v483, %v482
    %v551 = vpack.c.b16 %v485, %v484
    %v552 = vpack.c.b16 %v487, %v486
    %v553 = vpack.c.b16 %v489, %v488
    %618 = vmatprep.subr.bf16.mxu0 0
    %619 = vmatpush1.bf16.msra.mxu0 %v490
    %620 = vmatprep.subr.bf16.mxu0 0
    %621 = vmatpush1.bf16.msra.mxu0 %v491
    %622 = vmatprep.subr.bf16.mxu0 0
    %623 = vmatpush1.bf16.msra.mxu0 %v492
    %624 = vmatprep.subr.bf16.mxu0 0
    %625 = vmatpush1.bf16.msra.mxu0 %v493
    %626 = vmatprep.subr.bf16.mxu0 0
    %627 = vmatpush1.bf16.msra.mxu0 %v494
    %628 = vmatprep.subr.bf16.mxu0 0
    %629 = vmatpush1.bf16.msra.mxu0 %v495
    %630 = vmatprep.subr.bf16.mxu0 0
    %631 = vmatpush1.bf16.msra.mxu0 %v496
    %632 = vmatprep.subr.bf16.mxu0 0
    %633 = vmatpush1.bf16.msra.mxu0 %v497
    %634 = vmatprep.subr.bf16.mxu0 0
    %635 = vmatpush1.bf16.msra.mxu0 %v498
    %636 = vmatprep.subr.bf16.mxu0 0
    %637 = vmatpush1.bf16.msra.mxu0 %v499
    %638 = vmatprep.subr.bf16.mxu0 0
    %639 = vmatpush1.bf16.msra.mxu0 %v500
    %640 = vmatprep.subr.bf16.mxu0 0
    %641 = vmatpush1.bf16.msra.mxu0 %v501
    %642 = vmatprep.subr.bf16.mxu0 0
    %643 = vmatpush1.bf16.msra.mxu0 %v502
    %644 = vmatprep.subr.bf16.mxu0 0
    %645 = vmatpush1.bf16.msra.mxu0 %v503
    %646 = vmatprep.subr.bf16.mxu0 0
    %647 = vmatpush1.bf16.msra.mxu0 %v504
    %648 = vmatprep.subr.bf16.mxu0 0
    %649 = vmatpush1.bf16.msra.mxu0 %v505
    %650 = vmatprep.mubr.bf16.mxu0 %v93
    %651 = vmatmul.mubr.bf16.gmra.mrb[0].mxu0 %v92
    %v652 = vpop.f32.mrb[0].mxu0
    %v653 = vadd.f32 %v232, %v652
    %v654 = vpop.f32.mrb[0].mxu0
    %v655 = vpop.f32.mrb[0].mxu0
    %v656 = vpop.f32.mrb[0].mxu0
    %657 = vdwg.mxu0
    %658 = vmatprep.subr.bf16.mxu0 0
    %659 = vmatpush1.bf16.msra.mxu0 %v506
    %660 = vmatprep.subr.bf16.mxu0 0
    %661 = vmatpush1.bf16.msra.mxu0 %v507
    %662 = vmatprep.subr.bf16.mxu0 0
    %663 = vmatpush1.bf16.msra.mxu0 %v508
    %664 = vmatprep.subr.bf16.mxu0 0
    %665 = vmatpush1.bf16.msra.mxu0 %v509
    %666 = vmatprep.subr.bf16.mxu0 0
    %667 = vmatpush1.bf16.msra.mxu0 %v510
    %668 = vmatprep.subr.bf16.mxu0 0
    %669 = vmatpush1.bf16.msra.mxu0 %v511
    %670 = vmatprep.subr.bf16.mxu0 0
    %671 = vmatpush1.bf16.msra.mxu0 %v512
    %672 = vmatprep.subr.bf16.mxu0 0
    %673 = vmatpush1.bf16.msra.mxu0 %v513
    %674 = vmatprep.subr.bf16.mxu0 0
    %675 = vmatpush1.bf16.msra.mxu0 %v514
    %676 = vmatprep.subr.bf16.mxu0 0
    %677 = vmatpush1.bf16.msra.mxu0 %v515
    %678 = vmatprep.subr.bf16.mxu0 0
    %679 = vmatpush1.bf16.msra.mxu0 %v516
    %680 = vmatprep.subr.bf16.mxu0 0
    %681 = vmatpush1.bf16.msra.mxu0 %v517
    %682 = vmatprep.subr.bf16.mxu0 0
    %683 = vmatpush1.bf16.msra.mxu0 %v518
    %684 = vmatprep.subr.bf16.mxu0 0
    %685 = vmatpush1.bf16.msra.mxu0 %v519
    %686 = vmatprep.subr.bf16.mxu0 0
    %687 = vmatpush1.bf16.msra.mxu0 %v520
    %688 = vmatprep.subr.bf16.mxu0 0
    %689 = vmatpush1.bf16.msra.mxu0 %v521
    %690 = vmatprep.mubr.bf16.mxu0 %v95
    %691 = vmatmul.mubr.bf16.gmra.mrb[0].mxu0 %v94
    %v692 = vpop.f32.mrb[0].mxu0
    %v693 = vadd.f32 %v653, %v692
    %v694 = vpop.f32.mrb[0].mxu0
    %v695 = vpop.f32.mrb[0].mxu0
    %v696 = vpop.f32.mrb[0].mxu0
    %697 = vdwg.mxu0
    %698 = vmatprep.subr.bf16.mxu0 0
    %699 = vmatpush1.bf16.msra.mxu0 %v522
    %700 = vmatprep.subr.bf16.mxu0 0
    %701 = vmatpush1.bf16.msra.mxu0 %v523
    %702 = vmatprep.subr.bf16.mxu0 0
    %703 = vmatpush1.bf16.msra.mxu0 %v524
    %704 = vmatprep.subr.bf16.mxu0 0
    %705 = vmatpush1.bf16.msra.mxu0 %v525
    %706 = vmatprep.subr.bf16.mxu0 0
    %707 = vmatpush1.bf16.msra.mxu0 %v526
    %708 = vmatprep.subr.bf16.mxu0 0
    %709 = vmatpush1.bf16.msra.mxu0 %v527
    %710 = vmatprep.subr.bf16.mxu0 0
    %711 = vmatpush1.bf16.msra.mxu0 %v528
    %712 = vmatprep.subr.bf16.mxu0 0
    %713 = vmatpush1.bf16.msra.mxu0 %v529
    %714 = vmatprep.subr.bf16.mxu0 0
    %715 = vmatpush1.bf16.msra.mxu0 %v530
    %716 = vmatprep.subr.bf16.mxu0 0
    %717 = vmatpush1.bf16.msra.mxu0 %v531
    %718 = vmatprep.subr.bf16.mxu0 0
    %719 = vmatpush1.bf16.msra.mxu0 %v532
    %720 = vmatprep.subr.bf16.mxu0 0
    %721 = vmatpush1.bf16.msra.mxu0 %v533
    %722 = vmatprep.subr.bf16.mxu0 0
    %723 = vmatpush1.bf16.msra.mxu0 %v534
    %724 = vmatprep.subr.bf16.mxu0 0
    %725 = vmatpush1.bf16.msra.mxu0 %v535
    %726 = vmatprep.subr.bf16.mxu0 0
    %727 = vmatpush1.bf16.msra.mxu0 %v536
    %728 = vmatprep.subr.bf16.mxu0 0
    %729 = vmatpush1.bf16.msra.mxu0 %v537
    %730 = vmatprep.mubr.bf16.mxu0 %v97
    %731 = vmatmul.mubr.bf16.gmra.mrb[0].mxu0 %v96
    %v732 = vpop.f32.mrb[0].mxu0
    %v733 = vadd.f32 %v693, %v732
    %v734 = vpop.f32.mrb[0].mxu0
    %v735 = vpop.f32.mrb[0].mxu0
    %v736 = vpop.f32.mrb[0].mxu0
    %737 = vdwg.mxu0
    %738 = vmatprep.subr.bf16.mxu0 0
    %739 = vmatpush1.bf16.msra.mxu0 %v538
    %740 = vmatprep.subr.bf16.mxu0 0
    %741 = vmatpush1.bf16.msra.mxu0 %v539
    %742 = vmatprep.subr.bf16.mxu0 0
    %743 = vmatpush1.bf16.msra.mxu0 %v540
    %744 = vmatprep.subr.bf16.mxu0 0
    %745 = vmatpush1.bf16.msra.mxu0 %v541
    %746 = vmatprep.subr.bf16.mxu0 0
    %747 = vmatpush1.bf16.msra.mxu0 %v542
    %748 = vmatprep.subr.bf16.mxu0 0
    %749 = vmatpush1.bf16.msra.mxu0 %v543
    %750 = vmatprep.subr.bf16.mxu0 0
    %751 = vmatpush1.bf16.msra.mxu0 %v544
    %752 = vmatprep.subr.bf16.mxu0 0
    %753 = vmatpush1.bf16.msra.mxu0 %v545
    %754 = vmatprep.subr.bf16.mxu0 0
    %755 = vmatpush1.bf16.msra.mxu0 %v546
    %756 = vmatprep.subr.bf16.mxu0 0
    %757 = vmatpush1.bf16.msra.mxu0 %v547
    %758 = vmatprep.subr.bf16.mxu0 0
    %759 = vmatpush1.bf16.msra.mxu0 %v548
    %760 = vmatprep.subr.bf16.mxu0 0
    %761 = vmatpush1.bf16.msra.mxu0 %v549
    %762 = vmatprep.subr.bf16.mxu0 0
    %763 = vmatpush1.bf16.msra.mxu0 %v550
    %764 = vmatprep.subr.bf16.mxu0 0
    %765 = vmatpush1.bf16.msra.mxu0 %v551
    %766 = vmatprep.subr.bf16.mxu0 0
    %767 = vmatpush1.bf16.msra.mxu0 %v552
    %768 = vmatprep.subr.bf16.mxu0 0
    %769 = vmatpush1.bf16.msra.mxu0 %v553
    %770 = vmatprep.mubr.bf16.mxu0 %v99
    %771 = vmatmul.mubr.bf16.gmra.mrb[0].mxu0 %v98
    %v772 = vpop.f32.mrb[0].mxu0
    %v773 = vadd.f32 %v733, %v772
    %v774 = vpop.f32.mrb[0].mxu0
    %v775 = vpop.f32.mrb[0].mxu0
    %v776 = vpop.f32.mrb[0].mxu0
    %777 = vdwg.mxu0
    %v778 = vmax.f32 %v773, 0.0
    %v779 = vpack.c.bf16 %v778, %v778
    %v780 = vld [vmem:[#allocation7] sm:$0xf]
    %v781 = vld [vmem:[#allocation7 + $0x4] sm:$0xf]
    %v782 = vld [vmem:[#allocation7 + $0x8] sm:$0xf]
    %v783 = vld [vmem:[#allocation7 + $0xc] sm:$0xf]
    %v784 = vld [vmem:[#allocation7 + $0x10] sm:$0xf]
    %v785 = vld [vmem:[#allocation7 + $0x14] sm:$0xf]
    %v786 = vld [vmem:[#allocation7 + $0x18] sm:$0xf]
    %v787 = vld [vmem:[#allocation7 + $0x1c] sm:$0xf]
    %v788 = vld [vmem:[#allocation7 + $0x20] sm:$0xf]
    %v789 = vld [vmem:[#allocation7 + $0x24] sm:$0xf]
    %v790 = vld [vmem:[#allocation7 + $0x28] sm:$0xf]
    %v791 = vld [vmem:[#allocation7 + $0x2c] sm:$0xf]
    %v792 = vld [vmem:[#allocation7 + $0x30] sm:$0xf]
    %v793 = vld [vmem:[#allocation7 + $0x34] sm:$0xf]
    %v794 = vld [vmem:[#allocation7 + $0x38] sm:$0xf]
    %v795 = vld [vmem:[#allocation7 + $0x3c] sm:$0xf]
    %v797 = vlaneseq
    %v798 = vshrl.u32 %v797, 7
    %v799 = vsub.s32 0, %v798
    %v800 = vrot.slane %v82, %v799
    %v818 = vunpack.c.l.b16 %v780
    %v819 = vunpack.c.l.b16 %v781
    %v820 = vunpack.c.l.b16 %v782
    %v821 = vunpack.c.l.b16 %v783
    %v822 = vunpack.c.l.b16 %v784
    %v823 = vunpack.c.l.b16 %v785
    %v824 = vunpack.c.l.b16 %v786
    %v825 = vunpack.c.l.b16 %v787
    %v826 = vunpack.c.l.b16 %v788
    %v827 = vunpack.c.l.b16 %v789
    %v828 = vunpack.c.l.b16 %v790
    %v829 = vunpack.c.l.b16 %v791
    %v830 = vunpack.c.l.b16 %v792
    %v831 = vunpack.c.l.b16 %v793
    %v832 = vunpack.c.l.b16 %v794
    %v833 = vunpack.c.l.b16 %v795
    %v834 = vpack.c.b16 %v819, %v818
    %v835 = vpack.c.b16 %v821, %v820
    %v836 = vpack.c.b16 %v823, %v822
    %v837 = vpack.c.b16 %v825, %v824
    %v838 = vpack.c.b16 %v827, %v826
    %v839 = vpack.c.b16 %v829, %v828
    %v840 = vpack.c.b16 %v831, %v830
    %v841 = vpack.c.b16 %v833, %v832
    %850 = vmatprep.subr.bf16.mxu0 0
    %851 = vmatpush1.bf16.msra.mxu0 %v834
    %852 = vmatprep.subr.bf16.mxu0 0
    %853 = vmatpush1.bf16.msra.mxu0 %v835
    %854 = vmatprep.subr.bf16.mxu0 0
    %855 = vmatpush1.bf16.msra.mxu0 %v836
    %856 = vmatprep.subr.bf16.mxu0 0
    %857 = vmatpush1.bf16.msra.mxu0 %v837
    %858 = vmatprep.subr.bf16.mxu0 0
    %859 = vmatpush1.bf16.msra.mxu0 %v838
    %860 = vmatprep.subr.bf16.mxu0 0
    %861 = vmatpush1.bf16.msra.mxu0 %v839
    %862 = vmatprep.subr.bf16.mxu0 0
    %863 = vmatpush1.bf16.msra.mxu0 %v840
    %864 = vmatprep.subr.bf16.mxu0 0
    %865 = vmatpush1.bf16.msra.mxu0 %v841
    %866 = vmatprep.subr.bf16.mxu0 0
    %867 = vmatpush1.bf16.msra.mxu0 0
    %868 = vmatprep.subr.bf16.mxu0 0
    %869 = vmatpush1.bf16.msra.mxu0 0
    %870 = vmatprep.subr.bf16.mxu0 0
    %871 = vmatpush1.bf16.msra.mxu0 0
    %872 = vmatprep.subr.bf16.mxu0 0
    %873 = vmatpush1.bf16.msra.mxu0 0
    %874 = vmatprep.subr.bf16.mxu0 0
    %875 = vmatpush1.bf16.msra.mxu0 0
    %876 = vmatprep.subr.bf16.mxu0 0
    %877 = vmatpush1.bf16.msra.mxu0 0
    %878 = vmatprep.subr.bf16.mxu0 0
    %879 = vmatpush1.bf16.msra.mxu0 0
    %880 = vmatprep.subr.bf16.mxu0 0
    %881 = vmatpush1.bf16.msra.mxu0 0
    %882 = vmatprep.mubr.bf16.mxu0 0
    %883 = vmatmul.mubr.bf16.gmra.mrb[0].mxu0 %v779
    %v884 = vpop.f32.mrb[0].mxu0
    %v885 = vadd.f32 %v800, %v884
    %v886 = vpop.f32.mrb[0].mxu0
    %v887 = vpop.f32.mrb[0].mxu0
    %v888 = vpop.f32.mrb[0].mxu0
    %889 = vdwg.mxu0
    %v890 = vmax.f32 %v885, 0.0
    %v891 = vpack.c.bf16 %v890, %v890
    %v892 = vld [vmem:[#allocation8] sm:$0xff]
    %v893 = vld [vmem:[#allocation8 + $0x8] sm:$0xff]
    %v894 = vld [vmem:[#allocation8 + $0x10] sm:$0xff]
    %v895 = vld [vmem:[#allocation8 + $0x18] sm:$0xff]
    %v896 = vld [vmem:[#allocation8 + $0x20] sm:$0xff]
    %v897 = vld [vmem:[#allocation8 + $0x28] sm:$0xff]
    %v898 = vld [vmem:[#allocation8 + $0x30] sm:$0xff]
    %v899 = vld [vmem:[#allocation8 + $0x38] sm:$0xff]
    %v900 = vld [vmem:[#allocation8 + $0x40] sm:$0xff]
    %v901 = vld [vmem:[#allocation8 + $0x48] sm:$0xff]
    %v902 = vld [vmem:[#allocation8 + $0x50] sm:$0xff]
    %v903 = vld [vmem:[#allocation8 + $0x58] sm:$0xff]
    %v904 = vld [vmem:[#allocation8 + $0x60] sm:$0xff]
    %v905 = vld [vmem:[#allocation8 + $0x68] sm:$0xff]
    %v906 = vld [vmem:[#allocation8 + $0x70] sm:$0xff]
    %v907 = vld [vmem:[#allocation8 + $0x78] sm:$0xff]
    %v908 = vld [vmem:[#allocation8 + $0x80] sm:$0xff]
    %v909 = vld [vmem:[#allocation8 + $0x88] sm:$0xff]
    %v910 = vld [vmem:[#allocation8 + $0x90] sm:$0xff]
    %v911 = vld [vmem:[#allocation8 + $0x98] sm:$0xff]
    %v912 = vld [vmem:[#allocation8 + $0xa0] sm:$0xff]
    %v913 = vld [vmem:[#allocation8 + $0xa8] sm:$0xff]
    %v914 = vld [vmem:[#allocation8 + $0xb0] sm:$0xff]
    %v915 = vld [vmem:[#allocation8 + $0xb8] sm:$0xff]
    %v916 = vld [vmem:[#allocation8 + $0xc0] sm:$0xff]
    %v917 = vld [vmem:[#allocation8 + $0xc8] sm:$0xff]
    %v918 = vld [vmem:[#allocation8 + $0xd0] sm:$0xff]
    %v919 = vld [vmem:[#allocation8 + $0xd8] sm:$0xff]
    %v920 = vld [vmem:[#allocation8 + $0xe0] sm:$0xff]
    %v921 = vld [vmem:[#allocation8 + $0xe8] sm:$0xff]
    %v922 = vld [vmem:[#allocation8 + $0xf0] sm:$0xff]
    %v923 = vld [vmem:[#allocation8 + $0xf8] sm:$0xff]
    %v924 = vld [vmem:[#allocation8 + $0x100] sm:$0xff]
    %v925 = vld [vmem:[#allocation8 + $0x108] sm:$0xff]
    %v926 = vld [vmem:[#allocation8 + $0x110] sm:$0xff]
    %v927 = vld [vmem:[#allocation8 + $0x118] sm:$0xff]
    %v928 = vld [vmem:[#allocation8 + $0x120] sm:$0xff]
    %v929 = vld [vmem:[#allocation8 + $0x128] sm:$0xff]
    %v930 = vld [vmem:[#allocation8 + $0x130] sm:$0xff]
    %v931 = vld [vmem:[#allocation8 + $0x138] sm:$0xff]
    %v932 = vld [vmem:[#allocation8 + $0x140] sm:$0xff]
    %v933 = vld [vmem:[#allocation8 + $0x148] sm:$0xff]
    %v934 = vld [vmem:[#allocation8 + $0x150] sm:$0xff]
    %v935 = vld [vmem:[#allocation8 + $0x158] sm:$0xff]
    %v936 = vld [vmem:[#allocation8 + $0x160] sm:$0xff]
    %v937 = vld [vmem:[#allocation8 + $0x168] sm:$0xff]
    %v938 = vld [vmem:[#allocation8 + $0x170] sm:$0xff]
    %v939 = vld [vmem:[#allocation8 + $0x178] sm:$0xff]
    %v940 = vld [vmem:[#allocation8 + $0x180] sm:$0xff]
    %v941 = vld [vmem:[#allocation8 + $0x188] sm:$0xff]
    %v942 = vld [vmem:[#allocation8 + $0x190] sm:$0xff]
    %v943 = vld [vmem:[#allocation8 + $0x198] sm:$0xff]
    %v944 = vld [vmem:[#allocation8 + $0x1a0] sm:$0xff]
    %v945 = vld [vmem:[#allocation8 + $0x1a8] sm:$0xff]
    %v946 = vld [vmem:[#allocation8 + $0x1b0] sm:$0xff]
    %v947 = vld [vmem:[#allocation8 + $0x1b8] sm:$0xff]
    %v948 = vld [vmem:[#allocation8 + $0x1c0] sm:$0xff]
    %v949 = vld [vmem:[#allocation8 + $0x1c8] sm:$0xff]
    %v950 = vld [vmem:[#allocation8 + $0x1d0] sm:$0xff]
    %v951 = vld [vmem:[#allocation8 + $0x1d8] sm:$0xff]
    %v952 = vld [vmem:[#allocation8 + $0x1e0] sm:$0xff]
    %v953 = vld [vmem:[#allocation8 + $0x1e8] sm:$0xff]
    %v954 = vld [vmem:[#allocation8 + $0x1f0] sm:$0xff]
    %v955 = vld [vmem:[#allocation8 + $0x1f8] sm:$0xff]
    %v957 = vlaneseq
    %v958 = vshrl.u32 %v957, 7
    %v959 = vsub.s32 0, %v958
    %v960 = vrot.slane %v83, %v959
    %v961 = vlaneseq
    %v962 = vshrl.u32 %v961, 7
    %v963 = vsub.s32 1, %v962
    %v964 = vrot.slane %v83, %v963
    %v965 = vlaneseq
    %v966 = vshrl.u32 %v965, 7
    %v967 = vsub.s32 2, %v966
    %v968 = vrot.slane %v83, %v967
    %v969 = vlaneseq
    %v970 = vshrl.u32 %v969, 7
    %v971 = vsub.s32 3, %v970
    %v972 = vrot.slane %v83, %v971
    %v973 = vlaneseq
    %v974 = vshrl.u32 %v973, 7
    %v975 = vsub.s32 4, %v974
    %v976 = vrot.slane %v83, %v975
    %v977 = vlaneseq
    %v978 = vshrl.u32 %v977, 7
    %v979 = vsub.s32 5, %v978
    %v980 = vrot.slane %v83, %v979
    %v981 = vlaneseq
    %v982 = vshrl.u32 %v981, 7
    %v983 = vsub.s32 6, %v982
    %v984 = vrot.slane %v83, %v983
    %v985 = vlaneseq
    %v986 = vshrl.u32 %v985, 7
    %v987 = vsub.s32 7, %v986
    %v988 = vrot.slane %v83, %v987
    %v1061 = vunpack.c.l.b16 %v892
    %v1062 = vunpack.c.h.b16 %v892
    %v1063 = vunpack.c.l.b16 %v893
    %v1064 = vunpack.c.h.b16 %v893
    %v1065 = vunpack.c.l.b16 %v894
    %v1066 = vunpack.c.h.b16 %v894
    %v1067 = vunpack.c.l.b16 %v895
    %v1068 = vunpack.c.h.b16 %v895
    %v1069 = vunpack.c.l.b16 %v896
    %v1070 = vunpack.c.h.b16 %v896
    %v1071 = vunpack.c.l.b16 %v897
    %v1072 = vunpack.c.h.b16 %v897
    %v1073 = vunpack.c.l.b16 %v898
    %v1074 = vunpack.c.h.b16 %v898
    %v1075 = vunpack.c.l.b16 %v899
    %v1076 = vunpack.c.h.b16 %v899
    %v1077 = vunpack.c.l.b16 %v900
    %v1078 = vunpack.c.h.b16 %v900
    %v1079 = vunpack.c.l.b16 %v901
    %v1080 = vunpack.c.h.b16 %v901
    %v1081 = vunpack.c.l.b16 %v902
    %v1082 = vunpack.c.h.b16 %v902
    %v1083 = vunpack.c.l.b16 %v903
    %v1084 = vunpack.c.h.b16 %v903
    %v1085 = vunpack.c.l.b16 %v904
    %v1086 = vunpack.c.h.b16 %v904
    %v1087 = vunpack.c.l.b16 %v905
    %v1088 = vunpack.c.h.b16 %v905
    %v1089 = vunpack.c.l.b16 %v906
    %v1090 = vunpack.c.h.b16 %v906
    %v1091 = vunpack.c.l.b16 %v907
    %v1092 = vunpack.c.h.b16 %v907
    %v1093 = vunpack.c.l.b16 %v908
    %v1094 = vunpack.c.h.b16 %v908
    %v1095 = vunpack.c.l.b16 %v909
    %v1096 = vunpack.c.h.b16 %v909
    %v1097 = vunpack.c.l.b16 %v910
    %v1098 = vunpack.c.h.b16 %v910
    %v1099 = vunpack.c.l.b16 %v911
    %v1100 = vunpack.c.h.b16 %v911
    %v1101 = vunpack.c.l.b16 %v912
    %v1102 = vunpack.c.h.b16 %v912
    %v1103 = vunpack.c.l.b16 %v913
    %v1104 = vunpack.c.h.b16 %v913
    %v1105 = vunpack.c.l.b16 %v914
    %v1106 = vunpack.c.h.b16 %v914
    %v1107 = vunpack.c.l.b16 %v915
    %v1108 = vunpack.c.h.b16 %v915
    %v1109 = vunpack.c.l.b16 %v916
    %v1110 = vunpack.c.h.b16 %v916
    %v1111 = vunpack.c.l.b16 %v917
    %v1112 = vunpack.c.h.b16 %v917
    %v1113 = vunpack.c.l.b16 %v918
    %v1114 = vunpack.c.h.b16 %v918
    %v1115 = vunpack.c.l.b16 %v919
    %v1116 = vunpack.c.h.b16 %v919
    %v1117 = vunpack.c.l.b16 %v920
    %v1118 = vunpack.c.h.b16 %v920
    %v1119 = vunpack.c.l.b16 %v921
    %v1120 = vunpack.c.h.b16 %v921
    %v1121 = vunpack.c.l.b16 %v922
    %v1122 = vunpack.c.h.b16 %v922
    %v1123 = vunpack.c.l.b16 %v923
    %v1124 = vunpack.c.h.b16 %v923
    %v1125 = vunpack.c.l.b16 %v924
    %v1126 = vunpack.c.h.b16 %v924
    %v1127 = vunpack.c.l.b16 %v925
    %v1128 = vunpack.c.h.b16 %v925
    %v1129 = vunpack.c.l.b16 %v926
    %v1130 = vunpack.c.h.b16 %v926
    %v1131 = vunpack.c.l.b16 %v927
    %v1132 = vunpack.c.h.b16 %v927
    %v1133 = vunpack.c.l.b16 %v928
    %v1134 = vunpack.c.h.b16 %v928
    %v1135 = vunpack.c.l.b16 %v929
    %v1136 = vunpack.c.h.b16 %v929
    %v1137 = vunpack.c.l.b16 %v930
    %v1138 = vunpack.c.h.b16 %v930
    %v1139 = vunpack.c.l.b16 %v931
    %v1140 = vunpack.c.h.b16 %v931
    %v1141 = vunpack.c.l.b16 %v932
    %v1142 = vunpack.c.h.b16 %v932
    %v1143 = vunpack.c.l.b16 %v933
    %v1144 = vunpack.c.h.b16 %v933
    %v1145 = vunpack.c.l.b16 %v934
    %v1146 = vunpack.c.h.b16 %v934
    %v1147 = vunpack.c.l.b16 %v935
    %v1148 = vunpack.c.h.b16 %v935
    %v1149 = vunpack.c.l.b16 %v936
    %v1150 = vunpack.c.h.b16 %v936
    %v1151 = vunpack.c.l.b16 %v937
    %v1152 = vunpack.c.h.b16 %v937
    %v1153 = vunpack.c.l.b16 %v938
    %v1154 = vunpack.c.h.b16 %v938
    %v1155 = vunpack.c.l.b16 %v939
    %v1156 = vunpack.c.h.b16 %v939
    %v1157 = vunpack.c.l.b16 %v940
    %v1158 = vunpack.c.h.b16 %v940
    %v1159 = vunpack.c.l.b16 %v941
    %v1160 = vunpack.c.h.b16 %v941
    %v1161 = vunpack.c.l.b16 %v942
    %v1162 = vunpack.c.h.b16 %v942
    %v1163 = vunpack.c.l.b16 %v943
    %v1164 = vunpack.c.h.b16 %v943
    %v1165 = vunpack.c.l.b16 %v944
    %v1166 = vunpack.c.h.b16 %v944
    %v1167 = vunpack.c.l.b16 %v945
    %v1168 = vunpack.c.h.b16 %v945
    %v1169 = vunpack.c.l.b16 %v946
    %v1170 = vunpack.c.h.b16 %v946
    %v1171 = vunpack.c.l.b16 %v947
    %v1172 = vunpack.c.h.b16 %v947
    %v1173 = vunpack.c.l.b16 %v948
    %v1174 = vunpack.c.h.b16 %v948
    %v1175 = vunpack.c.l.b16 %v949
    %v1176 = vunpack.c.h.b16 %v949
    %v1177 = vunpack.c.l.b16 %v950
    %v1178 = vunpack.c.h.b16 %v950
    %v1179 = vunpack.c.l.b16 %v951
    %v1180 = vunpack.c.h.b16 %v951
    %v1181 = vunpack.c.l.b16 %v952
    %v1182 = vunpack.c.h.b16 %v952
    %v1183 = vunpack.c.l.b16 %v953
    %v1184 = vunpack.c.h.b16 %v953
    %v1185 = vunpack.c.l.b16 %v954
    %v1186 = vunpack.c.h.b16 %v954
    %v1187 = vunpack.c.l.b16 %v955
    %v1188 = vunpack.c.h.b16 %v955
    %v1189 = vpack.c.b16 %v1069, %v1061
    %v1190 = vpack.c.b16 %v1070, %v1062
    %v1191 = vpack.c.b16 %v1071, %v1063
    %v1192 = vpack.c.b16 %v1072, %v1064
    %v1193 = vpack.c.b16 %v1073, %v1065
    %v1194 = vpack.c.b16 %v1074, %v1066
    %v1195 = vpack.c.b16 %v1075, %v1067
    %v1196 = vpack.c.b16 %v1076, %v1068
    %v1197 = vpack.c.b16 %v1085, %v1077
    %v1198 = vpack.c.b16 %v1086, %v1078
    %v1199 = vpack.c.b16 %v1087, %v1079
    %v1200 = vpack.c.b16 %v1088, %v1080
    %v1201 = vpack.c.b16 %v1089, %v1081
    %v1202 = vpack.c.b16 %v1090, %v1082
    %v1203 = vpack.c.b16 %v1091, %v1083
    %v1204 = vpack.c.b16 %v1092, %v1084
    %v1205 = vpack.c.b16 %v1101, %v1093
    %v1206 = vpack.c.b16 %v1102, %v1094
    %v1207 = vpack.c.b16 %v1103, %v1095
    %v1208 = vpack.c.b16 %v1104, %v1096
    %v1209 = vpack.c.b16 %v1105, %v1097
    %v1210 = vpack.c.b16 %v1106, %v1098
    %v1211 = vpack.c.b16 %v1107, %v1099
    %v1212 = vpack.c.b16 %v1108, %v1100
    %v1213 = vpack.c.b16 %v1117, %v1109
    %v1214 = vpack.c.b16 %v1118, %v1110
    %v1215 = vpack.c.b16 %v1119, %v1111
    %v1216 = vpack.c.b16 %v1120, %v1112
    %v1217 = vpack.c.b16 %v1121, %v1113
    %v1218 = vpack.c.b16 %v1122, %v1114
    %v1219 = vpack.c.b16 %v1123, %v1115
    %v1220 = vpack.c.b16 %v1124, %v1116
    %v1221 = vpack.c.b16 %v1133, %v1125
    %v1222 = vpack.c.b16 %v1134, %v1126
    %v1223 = vpack.c.b16 %v1135, %v1127
    %v1224 = vpack.c.b16 %v1136, %v1128
    %v1225 = vpack.c.b16 %v1137, %v1129
    %v1226 = vpack.c.b16 %v1138, %v1130
    %v1227 = vpack.c.b16 %v1139, %v1131
    %v1228 = vpack.c.b16 %v1140, %v1132
    %v1229 = vpack.c.b16 %v1149, %v1141
    %v1230 = vpack.c.b16 %v1150, %v1142
    %v1231 = vpack.c.b16 %v1151, %v1143
    %v1232 = vpack.c.b16 %v1152, %v1144
    %v1233 = vpack.c.b16 %v1153, %v1145
    %v1234 = vpack.c.b16 %v1154, %v1146
    %v1235 = vpack.c.b16 %v1155, %v1147
    %v1236 = vpack.c.b16 %v1156, %v1148
    %v1237 = vpack.c.b16 %v1165, %v1157
    %v1238 = vpack.c.b16 %v1166, %v1158
    %v1239 = vpack.c.b16 %v1167, %v1159
    %v1240 = vpack.c.b16 %v1168, %v1160
    %v1241 = vpack.c.b16 %v1169, %v1161
    %v1242 = vpack.c.b16 %v1170, %v1162
    %v1243 = vpack.c.b16 %v1171, %v1163
    %v1244 = vpack.c.b16 %v1172, %v1164
    %v1245 = vpack.c.b16 %v1181, %v1173
    %v1246 = vpack.c.b16 %v1182, %v1174
    %v1247 = vpack.c.b16 %v1183, %v1175
    %v1248 = vpack.c.b16 %v1184, %v1176
    %v1249 = vpack.c.b16 %v1185, %v1177
    %v1250 = vpack.c.b16 %v1186, %v1178
    %v1251 = vpack.c.b16 %v1187, %v1179
    %v1252 = vpack.c.b16 %v1188, %v1180
    %1317 = vmatprep.subr.bf16.mxu0 %v1190
    %1318 = vmatpush1.bf16.msra.mxu0 %v1189
    %1319 = vmatprep.subr.bf16.mxu0 %v1198
    %1320 = vmatpush1.bf16.msra.mxu0 %v1197
    %1321 = vmatprep.subr.bf16.mxu0 %v1206
    %1322 = vmatpush1.bf16.msra.mxu0 %v1205
    %1323 = vmatprep.subr.bf16.mxu0 %v1214
    %1324 = vmatpush1.bf16.msra.mxu0 %v1213
    %1325 = vmatprep.subr.bf16.mxu0 %v1222
    %1326 = vmatpush1.bf16.msra.mxu0 %v1221
    %1327 = vmatprep.subr.bf16.mxu0 %v1230
    %1328 = vmatpush1.bf16.msra.mxu0 %v1229
    %1329 = vmatprep.subr.bf16.mxu0 %v1238
    %1330 = vmatpush1.bf16.msra.mxu0 %v1237
    %1331 = vmatprep.subr.bf16.mxu0 %v1246
    %1332 = vmatpush1.bf16.msra.mxu0 %v1245
    %1333 = vmatprep.subr.bf16.mxu0 0
    %1334 = vmatpush1.bf16.msra.mxu0 0
    %1335 = vmatprep.subr.bf16.mxu0 0
    %1336 = vmatpush1.bf16.msra.mxu0 0
    %1337 = vmatprep.subr.bf16.mxu0 0
    %1338 = vmatpush1.bf16.msra.mxu0 0
    %1339 = vmatprep.subr.bf16.mxu0 0
    %1340 = vmatpush1.bf16.msra.mxu0 0
    %1341 = vmatprep.subr.bf16.mxu0 0
    %1342 = vmatpush1.bf16.msra.mxu0 0
    %1343 = vmatprep.subr.bf16.mxu0 0
    %1344 = vmatpush1.bf16.msra.mxu0 0
    %1345 = vmatprep.subr.bf16.mxu0 0
    %1346 = vmatpush1.bf16.msra.mxu0 0
    %1347 = vmatprep.subr.bf16.mxu0 0
    %1348 = vmatpush1.bf16.msra.mxu0 0
    %1349 = vmatprep.mubr.bf16.mxu0 0
    %1350 = vmatmul.mubr.bf16.gmra.mrb[0].mxu0 %v891
    %v1351 = vpop.f32.mrb[0].mxu0
    %v1352 = vadd.f32 %v960, %v1351
    %v1353 = vpop.f32.mrb[0].mxu0
    %v1354 = vadd.f32 %v964, %v1353
    %v1355 = vpop.f32.mrb[0].mxu0
    %v1356 = vpop.f32.mrb[0].mxu0
    %1357 = vdwg.mxu0
    %1358 = vmatprep.subr.bf16.mxu0 %v1192
    %1359 = vmatpush1.bf16.msra.mxu0 %v1191
    %1360 = vmatprep.subr.bf16.mxu0 %v1200
    %1361 = vmatpush1.bf16.msra.mxu0 %v1199
    %1362 = vmatprep.subr.bf16.mxu0 %v1208
    %1363 = vmatpush1.bf16.msra.mxu0 %v1207
    %1364 = vmatprep.subr.bf16.mxu0 %v1216
    %1365 = vmatpush1.bf16.msra.mxu0 %v1215
    %1366 = vmatprep.subr.bf16.mxu0 %v1224
    %1367 = vmatpush1.bf16.msra.mxu0 %v1223
    %1368 = vmatprep.subr.bf16.mxu0 %v1232
    %1369 = vmatpush1.bf16.msra.mxu0 %v1231
    %1370 = vmatprep.subr.bf16.mxu0 %v1240
    %1371 = vmatpush1.bf16.msra.mxu0 %v1239
    %1372 = vmatprep.subr.bf16.mxu0 %v1248
    %1373 = vmatpush1.bf16.msra.mxu0 %v1247
    %1374 = vmatprep.subr.bf16.mxu0 0
    %1375 = vmatpush1.bf16.msra.mxu0 0
    %1376 = vmatprep.subr.bf16.mxu0 0
    %1377 = vmatpush1.bf16.msra.mxu0 0
    %1378 = vmatprep.subr.bf16.mxu0 0
    %1379 = vmatpush1.bf16.msra.mxu0 0
    %1380 = vmatprep.subr.bf16.mxu0 0
    %1381 = vmatpush1.bf16.msra.mxu0 0
    %1382 = vmatprep.subr.bf16.mxu0 0
    %1383 = vmatpush1.bf16.msra.mxu0 0
    %1384 = vmatprep.subr.bf16.mxu0 0
    %1385 = vmatpush1.bf16.msra.mxu0 0
    %1386 = vmatprep.subr.bf16.mxu0 0
    %1387 = vmatpush1.bf16.msra.mxu0 0
    %1388 = vmatprep.subr.bf16.mxu0 0
    %1389 = vmatpush1.bf16.msra.mxu0 0
    %1390 = vmatprep.mubr.bf16.mxu0 0
    %1391 = vmatmul.mubr.bf16.gmra.mrb[0].mxu0 %v891
    %v1392 = vpop.f32.mrb[0].mxu0
    %v1393 = vadd.f32 %v968, %v1392
    %v1394 = vpop.f32.mrb[0].mxu0
    %v1395 = vadd.f32 %v972, %v1394
    %v1396 = vpop.f32.mrb[0].mxu0
    %v1397 = vpop.f32.mrb[0].mxu0
    %1398 = vdwg.mxu0
    %1399 = vmatprep.subr.bf16.mxu0 %v1194
    %1400 = vmatpush1.bf16.msra.mxu0 %v1193
    %1401 = vmatprep.subr.bf16.mxu0 %v1202
    %1402 = vmatpush1.bf16.msra.mxu0 %v1201
    %1403 = vmatprep.subr.bf16.mxu0 %v1210
    %1404 = vmatpush1.bf16.msra.mxu0 %v1209
    %1405 = vmatprep.subr.bf16.mxu0 %v1218
    %1406 = vmatpush1.bf16.msra.mxu0 %v1217
    %1407 = vmatprep.subr.bf16.mxu0 %v1226
    %1408 = vmatpush1.bf16.msra.mxu0 %v1225
    %1409 = vmatprep.subr.bf16.mxu0 %v1234
    %1410 = vmatpush1.bf16.msra.mxu0 %v1233
    %1411 = vmatprep.subr.bf16.mxu0 %v1242
    %1412 = vmatpush1.bf16.msra.mxu0 %v1241
    %1413 = vmatprep.subr.bf16.mxu0 %v1250
    %1414 = vmatpush1.bf16.msra.mxu0 %v1249
    %1415 = vmatprep.subr.bf16.mxu0 0
    %1416 = vmatpush1.bf16.msra.mxu0 0
    %1417 = vmatprep.subr.bf16.mxu0 0
    %1418 = vmatpush1.bf16.msra.mxu0 0
    %1419 = vmatprep.subr.bf16.mxu0 0
    %1420 = vmatpush1.bf16.msra.mxu0 0
    %1421 = vmatprep.subr.bf16.mxu0 0
    %1422 = vmatpush1.bf16.msra.mxu0 0
    %1423 = vmatprep.subr.bf16.mxu0 0
    %1424 = vmatpush1.bf16.msra.mxu0 0
    %1425 = vmatprep.subr.bf16.mxu0 0
    %1426 = vmatpush1.bf16.msra.mxu0 0
    %1427 = vmatprep.subr.bf16.mxu0 0
    %1428 = vmatpush1.bf16.msra.mxu0 0
    %1429 = vmatprep.subr.bf16.mxu0 0
    %1430 = vmatpush1.bf16.msra.mxu0 0
    %1431 = vmatprep.mubr.bf16.mxu0 0
    %1432 = vmatmul.mubr.bf16.gmra.mrb[0].mxu0 %v891
    %v1433 = vpop.f32.mrb[0].mxu0
    %v1434 = vadd.f32 %v976, %v1433
    %v1435 = vpop.f32.mrb[0].mxu0
    %v1436 = vadd.f32 %v980, %v1435
    %v1437 = vpop.f32.mrb[0].mxu0
    %v1438 = vpop.f32.mrb[0].mxu0
    %1439 = vdwg.mxu0
    %1440 = vmatprep.subr.bf16.mxu0 %v1196
    %1441 = vmatpush1.bf16.msra.mxu0 %v1195
    %1442 = vmatprep.subr.bf16.mxu0 %v1204
    %1443 = vmatpush1.bf16.msra.mxu0 %v1203
    %1444 = vmatprep.subr.bf16.mxu0 %v1212
    %1445 = vmatpush1.bf16.msra.mxu0 %v1211
    %1446 = vmatprep.subr.bf16.mxu0 %v1220
    %1447 = vmatpush1.bf16.msra.mxu0 %v1219
    %1448 = vmatprep.subr.bf16.mxu0 %v1228
    %1449 = vmatpush1.bf16.msra.mxu0 %v1227
    %1450 = vmatprep.subr.bf16.mxu0 %v1236
    %1451 = vmatpush1.bf16.msra.mxu0 %v1235
    %1452 = vmatprep.subr.bf16.mxu0 %v1244
    %1453 = vmatpush1.bf16.msra.mxu0 %v1243
    %1454 = vmatprep.subr.bf16.mxu0 %v1252
    %1455 = vmatpush1.bf16.msra.mxu0 %v1251
    %1456 = vmatprep.subr.bf16.mxu0 0
    %1457 = vmatpush1.bf16.msra.mxu0 0
    %1458 = vmatprep.subr.bf16.mxu0 0
    %1459 = vmatpush1.bf16.msra.mxu0 0
    %1460 = vmatprep.subr.bf16.mxu0 0
    %1461 = vmatpush1.bf16.msra.mxu0 0
    %1462 = vmatprep.subr.bf16.mxu0 0
    %1463 = vmatpush1.bf16.msra.mxu0 0
    %1464 = vmatprep.subr.bf16.mxu0 0
    %1465 = vmatpush1.bf16.msra.mxu0 0
    %1466 = vmatprep.subr.bf16.mxu0 0
    %1467 = vmatpush1.bf16.msra.mxu0 0
    %1468 = vmatprep.subr.bf16.mxu0 0
    %1469 = vmatpush1.bf16.msra.mxu0 0
    %1470 = vmatprep.subr.bf16.mxu0 0
    %1471 = vmatpush1.bf16.msra.mxu0 0
    %1472 = vmatprep.mubr.bf16.mxu0 0
    %1473 = vmatmul.mubr.bf16.gmra.mrb[0].mxu0 %v891
    %v1474 = vpop.f32.mrb[0].mxu0
    %v1475 = vadd.f32 %v984, %v1474
    %v1476 = vpop.f32.mrb[0].mxu0
    %v1477 = vadd.f32 %v988, %v1476
    %v1478 = vpop.f32.mrb[0].mxu0
    %v1479 = vpop.f32.mrb[0].mxu0
    %1480 = vdwg.mxu0
    %1481 = vst [vmem:[#allocation10] sm:$0xff] %v1352
    %1482 = vst [vmem:[#allocation10 + $0x8] sm:$0xff] %v1354
    %1483 = vst [vmem:[#allocation10 + $0x10] sm:$0xff] %v1393
    %1484 = vst [vmem:[#allocation10 + $0x18] sm:$0xff] %v1395
    %1485 = vst [vmem:[#allocation10 + $0x20] sm:$0xff] %v1434
    %1486 = vst [vmem:[#allocation10 + $0x28] sm:$0xff] %v1436
    %1487 = vst [vmem:[#allocation10 + $0x30] sm:$0xff] %v1475
    %1488 = vst [vmem:[#allocation10 + $0x38] sm:$0xff] %v1477
    // Predicated region
    $region46: #{tpu_custom_call.1} parent=1 // pred_check
      _
    $region47: #{tpu_custom_call.1} parent=1 // pred_check_branch
      %1490 = sbr.rel (0) target = $region49
    $region48: #{tpu_custom_call.1} parent=1 // pred_region
      %s1492 = ssub.s32 1024, 1024
      %1493 = vsyncadd [#allocation4], %s1492
      %s1495 = sshll.u32 [#allocation10], 4
      %s1496 = int_to_ptr.vmem [resolvable:$true] %s1495
      %1498 = dma.vmem_to_hbm [thread:$0]  %s1496, 1024, %s7, [#allocation4]
    $region49: #{tpu_custom_call.1} parent=1 // pred_fallthru
      _
    // Predicated region
    $region50: #{tpu_custom_call.1} parent=1 // pred_check
      _
    $region51: #{tpu_custom_call.1} parent=1 // pred_check_branch
      %1500 = sbr.rel (0) target = $region53
    $region52: #{tpu_custom_call.1} parent=1 // pred_region
      %1501 = dma.done [#allocation4], 1024
    $region53: #{tpu_custom_call.1} parent=1 // pred_fallthru
      _
    %1502 = vsyncpa [#allocation3], 1
    %1503 = vsyncpa [#allocation6], 1
    %1504 = vsyncpa [#allocation9], 1
    %1505 = vsyncpa [#allocation4], 1

// kernel: tpu_custom_call.1
$region0: #{tpu_custom_call.1}
  #allocation0 [shape = 'u32[]', space=smem, size = 0x4, offset = 0x4, fixed_abs, tag = 'smem constant byte address 0x4 - core index']
  #allocation1 [shape = 'u32[144,128]{1,0:T(1,128)}', space=vmem, size = 0x12000, scoped, tag = 'internal scratch']
  %s0 = inlined_call_operand.hbm [shape: f32[8,1024], index: 0, kind: input, shape index: {}]
  %s1 = inlined_call_operand.hbm [shape: bf16[1024,128], index: 1, kind: input, shape index: {}]
  %s2 = inlined_call_operand.vmem [shape: f32[1,128], index: 2, kind: input, shape index: {}]
  %s3 = inlined_call_operand.hbm [shape: bf16[128,128], index: 3, kind: input, shape index: {}]
  %s4 = inlined_call_operand.vmem [shape: f32[1,128], index: 4, kind: input, shape index: {}]
  %s5 = inlined_call_operand.hbm [shape: bf16[128,1024], index: 5, kind: input, shape index: {}]
  %s6 = inlined_call_operand.vmem [shape: f32[1,1024], index: 6, kind: input, shape index: {}]
  %s7 = inlined_call_operand.hbm [shape: f32[8,1024], index: 7, kind: output, shape index: {}]
  %s8 = sld [smem:[#allocation0]]
  $region54: #{tpu_custom_call.1} parent=0
    _
  %s10 = ssub.s32 1, %s8
  %s11 = scalar_select 0, %s10, %s8
  $region1: #{tpu_custom_call.1} parent=0
    #allocation2 [shape = 'u8[32768]{0}', space=vmem, size = 0x8000, scoped, tag = 'input window, operand 0, single buffered']
    #allocation3 [shape = 's32[1]{0}', space=sflag, size = 0x4, scoped, tag = 'scoped memory for tpu_custom_call.1']
    #allocation4 [shape = 's32[1]{0}', space=sflag, size = 0x4, scoped, tag = 'scoped memory for tpu_custom_call.1']
    #allocation5 [shape = 'u8[262144]{0}', space=vmem, size = 0x40000, scoped, tag = 'input window, operand 1, single buffered']
    #allocation6 [shape = 's32[1]{0}', space=sflag, size = 0x4, scoped, tag = 'scoped memory for tpu_custom_call.1']
    #allocation7 [shape = 'u8[32768]{0}', space=vmem, size = 0x8000, scoped, tag = 'input window, operand 3, single buffered']
    #allocation8 [shape = 'u8[262144]{0}', space=vmem, size = 0x40000, scoped, tag = 'input window, operand 5, single buffered']
    #allocation9 [shape = 's32[1]{0}', space=sflag, size = 0x4, scoped, tag = 'scoped memory for tpu_custom_call.1']
    #allocation10 [shape = 'u8[32768]{0}', space=vmem, size = 0x8000, scoped, tag = 'output window, operand 0, single buffered']
    %12 = vsyncpa [#allocation3], 0
    %13 = vsyncpa [#allocation6], 0
    %14 = vsyncpa [#allocation9], 0
    %15 = vsyncpa [#allocation4], 0
    // Predicated region
    $region2: #{tpu_custom_call.1} parent=1 // pred_check
      _
    $region3: #{tpu_custom_call.1} parent=1 // pred_check_branch
      %17 = sbr.rel (0) target = $region5
    $region4: #{tpu_custom_call.1} parent=1 // pred_region
      %s19 = ssub.s32 1024, 1024
      %20 = vsyncadd [#allocation3], %s19
      %s22 = sshll.u32 [#allocation2], 4
      %s23 = int_to_ptr.vmem [resolvable:$true] %s22
      %25 = dma.hbm_to_vmem [thread:$0]  %s0, 1024, %s23, [#allocation3]
    $region5: #{tpu_custom_call.1} parent=1 // pred_fallthru
      _
    // Predicated region
    $region6: #{tpu_custom_call.1} parent=1 // pred_check
      _
    $region7: #{tpu_custom_call.1} parent=1 // pred_check_branch
      %27 = sbr.rel (0) target = $region9
    $region8: #{tpu_custom_call.1} parent=1 // pred_region
      %s29 = ssub.s32 8192, 8192
      %30 = vsyncadd [#allocation6], %s29
      %s31 = sshll.u32 [#allocation5], 4
      %s32 = int_to_ptr.vmem [resolvable:$true] %s31
      %37 = dma.hbm_to_vmem [thread:$0]  %s1, 8192, %s32, [#allocation6], 64, 64, 4
    $region9: #{tpu_custom_call.1} parent=1 // pred_fallthru
      _
    // Predicated region
    $region10: #{tpu_custom_call.1} parent=1 // pred_check
      _
    $region11: #{tpu_custom_call.1} parent=1 // pred_check_branch
      %39 = sbr.rel (0) target = $region13
    $region12: #{tpu_custom_call.1} parent=1 // pred_region
      _
    $region13: #{tpu_custom_call.1} parent=1 // pred_fallthru
      _
    // Predicated region
    $region14: #{tpu_custom_call.1} parent=1 // pred_check
      _
    $region15: #{tpu_custom_call.1} parent=1 // pred_check_branch
      %41 = sbr.rel (0) target = $region17
    $region16: #{tpu_custom_call.1} parent=1 // pred_region
      %s43 = ssub.s32 1024, 1024
      %44 = vsyncadd [#allocation6], %s43
      %s45 = sshll.u32 [#allocation7], 4
      %s46 = int_to_ptr.vmem [resolvable:$true] %s45
      %51 = dma.hbm_to_vmem [thread:$0]  %s3, 1024, %s46, [#allocation6], 64, 64, 4
    $region17: #{tpu_custom_call.1} parent=1 // pred_fallthru
      _
    // Predicated region
    $region18: #{tpu_custom_call.1} parent=1 // pred_check
      _
    $region19: #{tpu_custom_call.1} parent=1 // pred_check_branch
      %53 = sbr.rel (0) target = $region21
    $region20: #{tpu_custom_call.1} parent=1 // pred_region
      _
    $region21: #{tpu_custom_call.1} parent=1 // pred_fallthru
      _
    // Predicated region
    $region22: #{tpu_custom_call.1} parent=1 // pred_check
      _
    $region23: #{tpu_custom_call.1} parent=1 // pred_check_branch
      %55 = sbr.rel (0) target = $region25
    $region24: #{tpu_custom_call.1} parent=1 // pred_region
      %s57 = ssub.s32 8192, 8192
      %58 = vsyncadd [#allocation9], %s57
      %s59 = sshll.u32 [#allocation8], 4
      %s60 = int_to_ptr.vmem [resolvable:$true] %s59
      %65 = dma.hbm_to_vmem [thread:$0]  %s5, 8192, %s60, [#allocation9], 512, 512, 32
    $region25: #{tpu_custom_call.1} parent=1 // pred_fallthru
      _
    // Predicated region
    $region26: #{tpu_custom_call.1} parent=1 // pred_check
      _
    $region27: #{tpu_custom_call.1} parent=1 // pred_check_branch
      %67 = sbr.rel (0) target = $region29
    $region28: #{tpu_custom_call.1} parent=1 // pred_region
      _
    $region29: #{tpu_custom_call.1} parent=1 // pred_fallthru
      _
    // Predicated region
    $region30: #{tpu_custom_call.1} parent=1 // pred_check
      _
    $region31: #{tpu_custom_call.1} parent=1 // pred_check_branch
      %69 = sbr.rel (0) target = $region33
    $region32: #{tpu_custom_call.1} parent=1 // pred_region
      %70 = dma.done [#allocation3], 1024
    $region33: #{tpu_custom_call.1} parent=1 // pred_fallthru
      _
    // Predicated region
    $region34: #{tpu_custom_call.1} parent=1 // pred_check
      _
    $region35: #{tpu_custom_call.1} parent=1 // pred_check_branch
      %72 = sbr.rel (0) target = $region37
    $region36: #{tpu_custom_call.1} parent=1 // pred_region
      %73 = dma.done [#allocation6], 8192
    $region37: #{tpu_custom_call.1} parent=1 // pred_fallthru
      _
    // Predicated region
    $region38: #{tpu_custom_call.1} parent=1 // pred_check
      _
    $region39: #{tpu_custom_call.1} parent=1 // pred_check_branch
      %75 = sbr.rel (0) target = $region41
    $region40: #{tpu_custom_call.1} parent=1 // pred_region
      %76 = dma.done [#allocation6], 1024
    $region41: #{tpu_custom_call.1} parent=1 // pred_fallthru
      _
    // Predicated region
    $region42: #{tpu_custom_call.1} parent=1 // pred_check
      _
    $region43: #{tpu_custom_call.1} parent=1 // pred_check_branch
      %78 = sbr.rel (0) target = $region45
    $region44: #{tpu_custom_call.1} parent=1 // pred_region
      %79 = dma.done [#allocation9], 8192
    $region45: #{tpu_custom_call.1} parent=1 // pred_fallthru
      _
    %v81 = vld [vmem:[%s2] sm:$0x1]
    %v82 = vld [vmem:[%s4] sm:$0x1]
    %v83 = vld [vmem:[%s6] sm:$0xff]
    %v84 = vld [vmem:[#allocation2] sm:$0xff]
    %v85 = vld [vmem:[#allocation2 + $0x8] sm:$0xff]
    %v86 = vld [vmem:[#allocation2 + $0x10] sm:$0xff]
    %v87 = vld [vmem:[#allocation2 + $0x18] sm:$0xff]
    %v88 = vld [vmem:[#allocation2 + $0x20] sm:$0xff]
    %v89 = vld [vmem:[#allocation2 + $0x28] sm:$0xff]
    %v90 = vld [vmem:[#allocation2 + $0x30] sm:$0xff]
    %v91 = vld [vmem:[#allocation2 + $0x38] sm:$0xff]
    %v92 = vpack.c.bf16 %v84, %v84
    %v93 = vpack.c.bf16 %v85, %v85
    %v94 = vpack.c.bf16 %v86, %v86
    %v95 = vpack.c.bf16 %v87, %v87
    %v96 = vpack.c.bf16 %v88, %v88
    %v97 = vpack.c.bf16 %v89, %v89
    %v98 = vpack.c.bf16 %v90, %v90
    %v99 = vpack.c.bf16 %v91, %v91
    %v100 = vld [vmem:[#allocation5] sm:$0xf]
    %v101 = vld [vmem:[#allocation5 + $0x4] sm:$0xf]
    %v102 = vld [vmem:[#allocation5 + $0x8] sm:$0xf]
    %v103 = vld [vmem:[#allocation5 + $0xc] sm:$0xf]
    %v104 = vld [vmem:[#allocation5 + $0x10] sm:$0xf]
    %v105 = vld [vmem:[#allocation5 + $0x14] sm:$0xf]
    %v106 = vld [vmem:[#allocation5 + $0x18] sm:$0xf]
    %v107 = vld [vmem:[#allocation5 + $0x1c] sm:$0xf]
    %v108 = vld [vmem:[#allocation5 + $0x20] sm:$0xf]
    %v109 = vld [vmem:[#allocation5 + $0x24] sm:$0xf]
    %v110 = vld [vmem:[#allocation5 + $0x28] sm:$0xf]
    %v111 = vld [vmem:[#allocation5 + $0x2c] sm:$0xf]
    %v112 = vld [vmem:[#allocation5 + $0x30] sm:$0xf]
    %v113 = vld [vmem:[#allocation5 + $0x34] sm:$0xf]
    %v114 = vld [vmem:[#allocation5 + $0x38] sm:$0xf]
    %v115 = vld [vmem:[#allocation5 + $0x3c] sm:$0xf]
    %v116 = vld [vmem:[#allocation5 + $0x40] sm:$0xf]
    %v117 = vld [vmem:[#allocation5 + $0x44] sm:$0xf]
    %v118 = vld [vmem:[#allocation5 + $0x48] sm:$0xf]
    %v119 = vld [vmem:[#allocation5 + $0x4c] sm:$0xf]
    %v120 = vld [vmem:[#allocation5 + $0x50] sm:$0xf]
    %v121 = vld [vmem:[#allocation5 + $0x54] sm:$0xf]
    %v122 = vld [vmem:[#allocation5 + $0x58] sm:$0xf]
    %v123 = vld [vmem:[#allocation5 + $0x5c] sm:$0xf]
    %v124 = vld [vmem:[#allocation5 + $0x60] sm:$0xf]
    %v125 = vld [vmem:[#allocation5 + $0x64] sm:$0xf]
    %v126 = vld [vmem:[#allocation5 + $0x68] sm:$0xf]
    %v127 = vld [vmem:[#allocation5 + $0x6c] sm:$0xf]
    %v128 = vld [vmem:[#allocation5 + $0x70] sm:$0xf]
    %v129 = vld [vmem:[#allocation5 + $0x74] sm:$0xf]
    %v130 = vld [vmem:[#allocation5 + $0x78] sm:$0xf]
    %v131 = vld [vmem:[#allocation5 + $0x7c] sm:$0xf]
    %v132 = vld [vmem:[#allocation5 + $0x80] sm:$0xf]
    %v133 = vld [vmem:[#allocation5 + $0x84] sm:$0xf]
    %v134 = vld [vmem:[#allocation5 + $0x88] sm:$0xf]
    %v135 = vld [vmem:[#allocation5 + $0x8c] sm:$0xf]
    %v136 = vld [vmem:[#allocation5 + $0x90] sm:$0xf]
    %v137 = vld [vmem:[#allocation5 + $0x94] sm:$0xf]
    %v138 = vld [vmem:[#allocation5 + $0x98] sm:$0xf]
    %v139 = vld [vmem:[#allocation5 + $0x9c] sm:$0xf]
    %v140 = vld [vmem:[#allocation5 + $0xa0] sm:$0xf]
    %v141 = vld [vmem:[#allocation5 + $0xa4] sm:$0xf]
    %v142 = vld [vmem:[#allocation5 + $0xa8] sm:$0xf]
    %v143 = vld [vmem:[#allocation5 + $0xac] sm:$0xf]
    %v144 = vld [vmem:[#allocation5 + $0xb0] sm:$0xf]
    %v145 = vld [vmem:[#allocation5 + $0xb4] sm:$0xf]
    %v146 = vld [vmem:[#allocation5 + $0xb8] sm:$0xf]
    %v147 = vld [vmem:[#allocation5 + $0xbc] sm:$0xf]
    %v148 = vld [vmem:[#allocation5 + $0xc0] sm:$0xf]
    %v149 = vld [vmem:[#allocation5 + $0xc4] sm:$0xf]
    %v150 = vld [vmem:[#allocation5 + $0xc8] sm:$0xf]
    %v151 = vld [vmem:[#allocation5 + $0xcc] sm:$0xf]
    %v152 = vld [vmem:[#allocation5 + $0xd0] sm:$0xf]
    %v153 = vld [vmem:[#allocation5 + $0xd4] sm:$0xf]
    %v154 = vld [vmem:[#allocation5 + $0xd8] sm:$0xf]
    %v155 = vld [vmem:[#allocation5 + $0xdc] sm:$0xf]
    %v156 = vld [vmem:[#allocation5 + $0xe0] sm:$0xf]
    %v157 = vld [vmem:[#allocation5 + $0xe4] sm:$0xf]
    %v158 = vld [vmem:[#allocation5 + $0xe8] sm:$0xf]
    %v159 = vld [vmem:[#allocation5 + $0xec] sm:$0xf]
    %v160 = vld [vmem:[#allocation5 + $0xf0] sm:$0xf]
    %v161 = vld [vmem:[#allocation5 + $0xf4] sm:$0xf]
    %v162 = vld [vmem:[#allocation5 + $0xf8] sm:$0xf]
    %v163 = vld [vmem:[#allocation5 + $0xfc] sm:$0xf]
    %v164 = vld [vmem:[#allocation5 + $0x100] sm:$0xf]
    %v165 = vld [vmem:[#allocation5 + $0x104] sm:$0xf]
    %v166 = vld [vmem:[#allocation5 + $0x108] sm:$0xf]
    %v167 = vld [vmem:[#allocation5 + $0x10c] sm:$0xf]
    %v168 = vld [vmem:[#allocation5 + $0x110] sm:$0xf]
    %v169 = vld [vmem:[#allocation5 + $0x114] sm:$0xf]
    %v170 = vld [vmem:[#allocation5 + $0x118] sm:$0xf]
    %v171 = vld [vmem:[#allocation5 + $0x11c] sm:$0xf]
    %v172 = vld [vmem:[#allocation5 + $0x120] sm:$0xf]
    %v173 = vld [vmem:[#allocation5 + $0x124] sm:$0xf]
    %v174 = vld [vmem:[#allocation5 + $0x128] sm:$0xf]
    %v175 = vld [vmem:[#allocation5 + $0x12c] sm:$0xf]
    %v176 = vld [vmem:[#allocation5 + $0x130] sm:$0xf]
    %v177 = vld [vmem:[#allocation5 + $0x134] sm:$0xf]
    %v178 = vld [vmem:[#allocation5 + $0x138] sm:$0xf]
    %v179 = vld [vmem:[#allocation5 + $0x13c] sm:$0xf]
    %v180 = vld [vmem:[#allocation5 + $0x140] sm:$0xf]
    %v181 = vld [vmem:[#allocation5 + $0x144] sm:$0xf]
    %v182 = vld [vmem:[#allocation5 + $0x148] sm:$0xf]
    %v183 = vld [vmem:[#allocation5 + $0x14c] sm:$0xf]
    %v184 = vld [vmem:[#allocation5 + $0x150] sm:$0xf]
    %v185 = vld [vmem:[#allocation5 + $0x154] sm:$0xf]
    %v186 = vld [vmem:[#allocation5 + $0x158] sm:$0xf]
    %v187 = vld [vmem:[#allocation5 + $0x15c] sm:$0xf]
    %v188 = vld [vmem:[#allocation5 + $0x160] sm:$0xf]
    %v189 = vld [vmem:[#allocation5 + $0x164] sm:$0xf]
    %v190 = vld [vmem:[#allocation5 + $0x168] sm:$0xf]
    %v191 = vld [vmem:[#allocation5 + $0x16c] sm:$0xf]
    %v192 = vld [vmem:[#allocation5 + $0x170] sm:$0xf]
    %v193 = vld [vmem:[#allocation5 + $0x174] sm:$0xf]
    %v194 = vld [vmem:[#allocation5 + $0x178] sm:$0xf]
    %v195 = vld [vmem:[#allocation5 + $0x17c] sm:$0xf]
    %v196 = vld [vmem:[#allocation5 + $0x180] sm:$0xf]
    %v197 = vld [vmem:[#allocation5 + $0x184] sm:$0xf]
    %v198 = vld [vmem:[#allocation5 + $0x188] sm:$0xf]
    %v199 = vld [vmem:[#allocation5 + $0x18c] sm:$0xf]
    %v200 = vld [vmem:[#allocation5 + $0x190] sm:$0xf]
    %v201 = vld [vmem:[#allocation5 + $0x194] sm:$0xf]
    %v202 = vld [vmem:[#allocation5 + $0x198] sm:$0xf]
    %v203 = vld [vmem:[#allocation5 + $0x19c] sm:$0xf]
    %v204 = vld [vmem:[#allocation5 + $0x1a0] sm:$0xf]
    %v205 = vld [vmem:[#allocation5 + $0x1a4] sm:$0xf]
    %v206 = vld [vmem:[#allocation5 + $0x1a8] sm:$0xf]
    %v207 = vld [vmem:[#allocation5 + $0x1ac] sm:$0xf]
    %v208 = vld [vmem:[#allocation5 + $0x1b0] sm:$0xf]
    %v209 = vld [vmem:[#allocation5 + $0x1b4] sm:$0xf]
    %v210 = vld [vmem:[#allocation5 + $0x1b8] sm:$0xf]
    %v211 = vld [vmem:[#allocation5 + $0x1bc] sm:$0xf]
    %v212 = vld [vmem:[#allocation5 + $0x1c0] sm:$0xf]
    %v213 = vld [vmem:[#allocation5 + $0x1c4] sm:$0xf]
    %v214 = vld [vmem:[#allocation5 + $0x1c8] sm:$0xf]
    %v215 = vld [vmem:[#allocation5 + $0x1cc] sm:$0xf]
    %v216 = vld [vmem:[#allocation5 + $0x1d0] sm:$0xf]
    %v217 = vld [vmem:[#allocation5 + $0x1d4] sm:$0xf]
    %v218 = vld [vmem:[#allocation5 + $0x1d8] sm:$0xf]
    %v219 = vld [vmem:[#allocation5 + $0x1dc] sm:$0xf]
    %v220 = vld [vmem:[#allocation5 + $0x1e0] sm:$0xf]
    %v221 = vld [vmem:[#allocation5 + $0x1e4] sm:$0xf]
    %v222 = vld [vmem:[#allocation5 + $0x1e8] sm:$0xf]
    %v223 = vld [vmem:[#allocation5 + $0x1ec] sm:$0xf]
    %v224 = vld [vmem:[#allocation5 + $0x1f0] sm:$0xf]
    %v225 = vld [vmem:[#allocation5 + $0x1f4] sm:$0xf]
    %v226 = vld [vmem:[#allocation5 + $0x1f8] sm:$0xf]
    %v227 = vld [vmem:[#allocation5 + $0x1fc] sm:$0xf]
    %v229 = vlaneseq
    %v230 = vshrl.u32 %v229, 7
    %v231 = vsub.s32 0, %v230
    %v232 = vrot.slane %v81, %v231
    %v362 = vunpack.c.l.b16 %v100
    %v363 = vunpack.c.l.b16 %v101
    %v364 = vunpack.c.l.b16 %v102
    %v365 = vunpack.c.l.b16 %v103
    %v366 = vunpack.c.l.b16 %v104
    %v367 = vunpack.c.l.b16 %v105
    %v368 = vunpack.c.l.b16 %v106
    %v369 = vunpack.c.l.b16 %v107
    %v370 = vunpack.c.l.b16 %v108
    %v371 = vunpack.c.l.b16 %v109
    %v372 = vunpack.c.l.b16 %v110
    %v373 = vunpack.c.l.b16 %v111
    %v374 = vunpack.c.l.b16 %v112
    %v375 = vunpack.c.l.b16 %v113
    %v376 = vunpack.c.l.b16 %v114
    %v377 = vunpack.c.l.b16 %v115
    %v378 = vunpack.c.l.b16 %v116
    %v379 = vunpack.c.l.b16 %v117
    %v380 = vunpack.c.l.b16 %v118
    %v381 = vunpack.c.l.b16 %v119
    %v382 = vunpack.c.l.b16 %v120
    %v383 = vunpack.c.l.b16 %v121
    %v384 = vunpack.c.l.b16 %v122
    %v385 = vunpack.c.l.b16 %v123
    %v386 = vunpack.c.l.b16 %v124
    %v387 = vunpack.c.l.b16 %v125
    %v388 = vunpack.c.l.b16 %v126
    %v389 = vunpack.c.l.b16 %v127
    %v390 = vunpack.c.l.b16 %v128
    %v391 = vunpack.c.l.b16 %v129
    %v392 = vunpack.c.l.b16 %v130
    %v393 = vunpack.c.l.b16 %v131
    %v394 = vunpack.c.l.b16 %v132
    %v395 = vunpack.c.l.b16 %v133
    %v396 = vunpack.c.l.b16 %v134
    %v397 = vunpack.c.l.b16 %v135
    %v398 = vunpack.c.l.b16 %v136
    %v399 = vunpack.c.l.b16 %v137
    %v400 = vunpack.c.l.b16 %v138
    %v401 = vunpack.c.l.b16 %v139
    %v402 = vunpack.c.l.b16 %v140
    %v403 = vunpack.c.l.b16 %v141
    %v404 = vunpack.c.l.b16 %v142
    %v405 = vunpack.c.l.b16 %v143
    %v406 = vunpack.c.l.b16 %v144
    %v407 = vunpack.c.l.b16 %v145
    %v408 = vunpack.c.l.b16 %v146
    %v409 = vunpack.c.l.b16 %v147
    %v410 = vunpack.c.l.b16 %v148
    %v411 = vunpack.c.l.b16 %v149
    %v412 = vunpack.c.l.b16 %v150
    %v413 = vunpack.c.l.b16 %v151
    %v414 = vunpack.c.l.b16 %v152
    %v415 = vunpack.c.l.b16 %v153
    %v416 = vunpack.c.l.b16 %v154
    %v417 = vunpack.c.l.b16 %v155
    %v418 = vunpack.c.l.b16 %v156
    %v419 = vunpack.c.l.b16 %v157
    %v420 = vunpack.c.l.b16 %v158
    %v421 = vunpack.c.l.b16 %v159
    %v422 = vunpack.c.l.b16 %v160
    %v423 = vunpack.c.l.b16 %v161
    %v424 = vunpack.c.l.b16 %v162
    %v425 = vunpack.c.l.b16 %v163
    %v426 = vunpack.c.l.b16 %v164
    %v427 = vunpack.c.l.b16 %v165
    %v428 = vunpack.c.l.b16 %v166
    %v429 = vunpack.c.l.b16 %v167
    %v430 = vunpack.c.l.b16 %v168
    %v431 = vunpack.c.l.b16 %v169
    %v432 = vunpack.c.l.b16 %v170
    %v433 = vunpack.c.l.b16 %v171
    %v434 = vunpack.c.l.b16 %v172
    %v435 = vunpack.c.l.b16 %v173
    %v436 = vunpack.c.l.b16 %v174
    %v437 = vunpack.c.l.b16 %v175
    %v438 = vunpack.c.l.b16 %v176
    %v439 = vunpack.c.l.b16 %v177
    %v440 = vunpack.c.l.b16 %v178
    %v441 = vunpack.c.l.b16 %v179
    %v442 = vunpack.c.l.b16 %v180
    %v443 = vunpack.c.l.b16 %v181
    %v444 = vunpack.c.l.b16 %v182
    %v445 = vunpack.c.l.b16 %v183
    %v446 = vunpack.c.l.b16 %v184
    %v447 = vunpack.c.l.b16 %v185
    %v448 = vunpack.c.l.b16 %v186
    %v449 = vunpack.c.l.b16 %v187
    %v450 = vunpack.c.l.b16 %v188
    %v451 = vunpack.c.l.b16 %v189
    %v452 = vunpack.c.l.b16 %v190
    %v453 = vunpack.c.l.b16 %v191
    %v454 = vunpack.c.l.b16 %v192
    %v455 = vunpack.c.l.b16 %v193
    %v456 = vunpack.c.l.b16 %v194
    %v457 = vunpack.c.l.b16 %v195
    %v458 = vunpack.c.l.b16 %v196
    %v459 = vunpack.c.l.b16 %v197
    %v460 = vunpack.c.l.b16 %v198
    %v461 = vunpack.c.l.b16 %v199
    %v462 = vunpack.c.l.b16 %v200
    %v463 = vunpack.c.l.b16 %v201
    %v464 = vunpack.c.l.b16 %v202
    %v465 = vunpack.c.l.b16 %v203
    %v466 = vunpack.c.l.b16 %v204
    %v467 = vunpack.c.l.b16 %v205
    %v468 = vunpack.c.l.b16 %v206
    %v469 = vunpack.c.l.b16 %v207
    %v470 = vunpack.c.l.b16 %v208
    %v471 = vunpack.c.l.b16 %v209
    %v472 = vunpack.c.l.b16 %v210
    %v473 = vunpack.c.l.b16 %v211
    %v474 = vunpack.c.l.b16 %v212
    %v475 = vunpack.c.l.b16 %v213
    %v476 = vunpack.c.l.b16 %v214
    %v477 = vunpack.c.l.b16 %v215
    %v478 = vunpack.c.l.b16 %v216
    %v479 = vunpack.c.l.b16 %v217
    %v480 = vunpack.c.l.b16 %v218
    %v481 = vunpack.c.l.b16 %v219
    %v482 = vunpack.c.l.b16 %v220
    %v483 = vunpack.c.l.b16 %v221
    %v484 = vunpack.c.l.b16 %v222
    %v485 = vunpack.c.l.b16 %v223
    %v486 = vunpack.c.l.b16 %v224
    %v487 = vunpack.c.l.b16 %v225
    %v488 = vunpack.c.l.b16 %v226
    %v489 = vunpack.c.l.b16 %v227
    %v490 = vpack.c.b16 %v363, %v362
    %v491 = vpack.c.b16 %v365, %v364
    %v492 = vpack.c.b16 %v367, %v366
    %v493 = vpack.c.b16 %v369, %v368
    %v494 = vpack.c.b16 %v371, %v370
    %v495 = vpack.c.b16 %v373, %v372
    %v496 = vpack.c.b16 %v375, %v374
    %v497 = vpack.c.b16 %v377, %v376
    %v498 = vpack.c.b16 %v379, %v378
    %v499 = vpack.c.b16 %v381, %v380
    %v500 = vpack.c.b16 %v383, %v382
    %v501 = vpack.c.b16 %v385, %v384
    %v502 = vpack.c.b16 %v387, %v386
    %v503 = vpack.c.b16 %v389, %v388
    %v504 = vpack.c.b16 %v391, %v390
    %v505 = vpack.c.b16 %v393, %v392
    %v506 = vpack.c.b16 %v395, %v394
    %v507 = vpack.c.b16 %v397, %v396
    %v508 = vpack.c.b16 %v399, %v398
    %v509 = vpack.c.b16 %v401, %v400
    %v510 = vpack.c.b16 %v403, %v402
    %v511 = vpack.c.b16 %v405, %v404
    %v512 = vpack.c.b16 %v407, %v406
    %v513 = vpack.c.b16 %v409, %v408
    %v514 = vpack.c.b16 %v411, %v410
    %v515 = vpack.c.b16 %v413, %v412
    %v516 = vpack.c.b16 %v415, %v414
    %v517 = vpack.c.b16 %v417, %v416
    %v518 = vpack.c.b16 %v419, %v418
    %v519 = vpack.c.b16 %v421, %v420
    %v520 = vpack.c.b16 %v423, %v422
    %v521 = vpack.c.b16 %v425, %v424
    %v522 = vpack.c.b16 %v427, %v426
    %v523 = vpack.c.b16 %v429, %v428
    %v524 = vpack.c.b16 %v431, %v430
    %v525 = vpack.c.b16 %v433, %v432
    %v526 = vpack.c.b16 %v435, %v434
    %v527 = vpack.c.b16 %v437, %v436
    %v528 = vpack.c.b16 %v439, %v438
    %v529 = vpack.c.b16 %v441, %v440
    %v530 = vpack.c.b16 %v443, %v442
    %v531 = vpack.c.b16 %v445, %v444
    %v532 = vpack.c.b16 %v447, %v446
    %v533 = vpack.c.b16 %v449, %v448
    %v534 = vpack.c.b16 %v451, %v450
    %v535 = vpack.c.b16 %v453, %v452
    %v536 = vpack.c.b16 %v455, %v454
    %v537 = vpack.c.b16 %v457, %v456
    %v538 = vpack.c.b16 %v459, %v458
    %v539 = vpack.c.b16 %v461, %v460
    %v540 = vpack.c.b16 %v463, %v462
    %v541 = vpack.c.b16 %v465, %v464
    %v542 = vpack.c.b16 %v467, %v466
    %v543 = vpack.c.b16 %v469, %v468
    %v544 = vpack.c.b16 %v471, %v470
    %v545 = vpack.c.b16 %v473, %v472
    %v546 = vpack.c.b16 %v475, %v474
    %v547 = vpack.c.b16 %v477, %v476
    %v548 = vpack.c.b16 %v479, %v478
    %v549 = vpack.c.b16 %v481, %v480
    %v550 = vpack.c.b16 %v483, %v482
    %v551 = vpack.c.b16 %v485, %v484
    %v552 = vpack.c.b16 %v487, %v486
    %v553 = vpack.c.b16 %v489, %v488
    %618 = vmatprep.subr.bf16.mxu0 0
    %619 = vmatpush1.bf16.msra.mxu0 %v490
    %620 = vmatprep.subr.bf16.mxu0 0
    %621 = vmatpush1.bf16.msra.mxu0 %v491
    %622 = vmatprep.subr.bf16.mxu0 0
    %623 = vmatpush1.bf16.msra.mxu0 %v492
    %624 = vmatprep.subr.bf16.mxu0 0
    %625 = vmatpush1.bf16.msra.mxu0 %v493
    %626 = vmatprep.subr.bf16.mxu0 0
    %627 = vmatpush1.bf16.msra.mxu0 %v494
    %628 = vmatprep.subr.bf16.mxu0 0
    %629 = vmatpush1.bf16.msra.mxu0 %v495
    %630 = vmatprep.subr.bf16.mxu0 0
    %631 = vmatpush1.bf16.msra.mxu0 %v496
    %632 = vmatprep.subr.bf16.mxu0 0
    %633 = vmatpush1.bf16.msra.mxu0 %v497
    %634 = vmatprep.subr.bf16.mxu0 0
    %635 = vmatpush1.bf16.msra.mxu0 %v498
    %636 = vmatprep.subr.bf16.mxu0 0
    %637 = vmatpush1.bf16.msra.mxu0 %v499
    %638 = vmatprep.subr.bf16.mxu0 0
    %639 = vmatpush1.bf16.msra.mxu0 %v500
    %640 = vmatprep.subr.bf16.mxu0 0
    %641 = vmatpush1.bf16.msra.mxu0 %v501
    %642 = vmatprep.subr.bf16.mxu0 0
    %643 = vmatpush1.bf16.msra.mxu0 %v502
    %644 = vmatprep.subr.bf16.mxu0 0
    %645 = vmatpush1.bf16.msra.mxu0 %v503
    %646 = vmatprep.subr.bf16.mxu0 0
    %647 = vmatpush1.bf16.msra.mxu0 %v504
    %648 = vmatprep.subr.bf16.mxu0 0
    %649 = vmatpush1.bf16.msra.mxu0 %v505
    %650 = vmatprep.mubr.bf16.mxu0 %v93
    %651 = vmatmul.mubr.bf16.gmra.mrb[0].mxu0 %v92
    %v652 = vpop.f32.mrb[0].mxu0
    %v653 = vadd.f32 %v232, %v652
    %v654 = vpop.f32.mrb[0].mxu0
    %v655 = vpop.f32.mrb[0].mxu0
    %v656 = vpop.f32.mrb[0].mxu0
    %657 = vdwg.mxu0
    %658 = vmatprep.subr.bf16.mxu0 0
    %659 = vmatpush1.bf16.msra.mxu0 %v506
    %660 = vmatprep.subr.bf16.mxu0 0
    %661 = vmatpush1.bf16.msra.mxu0 %v507
    %662 = vmatprep.subr.bf16.mxu0 0
    %663 = vmatpush1.bf16.msra.mxu0 %v508
    %664 = vmatprep.subr.bf16.mxu0 0
    %665 = vmatpush1.bf16.msra.mxu0 %v509
    %666 = vmatprep.subr.bf16.mxu0 0
    %667 = vmatpush1.bf16.msra.mxu0 %v510
    %668 = vmatprep.subr.bf16.mxu0 0
    %669 = vmatpush1.bf16.msra.mxu0 %v511
    %670 = vmatprep.subr.bf16.mxu0 0
    %671 = vmatpush1.bf16.msra.mxu0 %v512
    %672 = vmatprep.subr.bf16.mxu0 0
    %673 = vmatpush1.bf16.msra.mxu0 %v513
    %674 = vmatprep.subr.bf16.mxu0 0
    %675 = vmatpush1.bf16.msra.mxu0 %v514
    %676 = vmatprep.subr.bf16.mxu0 0
    %677 = vmatpush1.bf16.msra.mxu0 %v515
    %678 = vmatprep.subr.bf16.mxu0 0
    %679 = vmatpush1.bf16.msra.mxu0 %v516
    %680 = vmatprep.subr.bf16.mxu0 0
    %681 = vmatpush1.bf16.msra.mxu0 %v517
    %682 = vmatprep.subr.bf16.mxu0 0
    %683 = vmatpush1.bf16.msra.mxu0 %v518
    %684 = vmatprep.subr.bf16.mxu0 0
    %685 = vmatpush1.bf16.msra.mxu0 %v519
    %686 = vmatprep.subr.bf16.mxu0 0
    %687 = vmatpush1.bf16.msra.mxu0 %v520
    %688 = vmatprep.subr.bf16.mxu0 0
    %689 = vmatpush1.bf16.msra.mxu0 %v521
    %690 = vmatprep.mubr.bf16.mxu0 %v95
    %691 = vmatmul.mubr.bf16.gmra.mrb[0].mxu0 %v94
    %v692 = vpop.f32.mrb[0].mxu0
    %v693 = vadd.f32 %v653, %v692
    %v694 = vpop.f32.mrb[0].mxu0
    %v695 = vpop.f32.mrb[0].mxu0
    %v696 = vpop.f32.mrb[0].mxu0
    %697 = vdwg.mxu0
    %698 = vmatprep.subr.bf16.mxu0 0
    %699 = vmatpush1.bf16.msra.mxu0 %v522
    %700 = vmatprep.subr.bf16.mxu0 0
    %701 = vmatpush1.bf16.msra.mxu0 %v523
    %702 = vmatprep.subr.bf16.mxu0 0
    %703 = vmatpush1.bf16.msra.mxu0 %v524
    %704 = vmatprep.subr.bf16.mxu0 0
    %705 = vmatpush1.bf16.msra.mxu0 %v525
    %706 = vmatprep.subr.bf16.mxu0 0
    %707 = vmatpush1.bf16.msra.mxu0 %v526
    %708 = vmatprep.subr.bf16.mxu0 0
    %709 = vmatpush1.bf16.msra.mxu0 %v527
    %710 = vmatprep.subr.bf16.mxu0 0
    %711 = vmatpush1.bf16.msra.mxu0 %v528
    %712 = vmatprep.subr.bf16.mxu0 0
    %713 = vmatpush1.bf16.msra.mxu0 %v529
    %714 = vmatprep.subr.bf16.mxu0 0
    %715 = vmatpush1.bf16.msra.mxu0 %v530
    %716 = vmatprep.subr.bf16.mxu0 0
    %717 = vmatpush1.bf16.msra.mxu0 %v531
    %718 = vmatprep.subr.bf16.mxu0 0
    %719 = vmatpush1.bf16.msra.mxu0 %v532
    %720 = vmatprep.subr.bf16.mxu0 0
    %721 = vmatpush1.bf16.msra.mxu0 %v533
    %722 = vmatprep.subr.bf16.mxu0 0
    %723 = vmatpush1.bf16.msra.mxu0 %v534
    %724 = vmatprep.subr.bf16.mxu0 0
    %725 = vmatpush1.bf16.msra.mxu0 %v535
    %726 = vmatprep.subr.bf16.mxu0 0
    %727 = vmatpush1.bf16.msra.mxu0 %v536
    %728 = vmatprep.subr.bf16.mxu0 0
    %729 = vmatpush1.bf16.msra.mxu0 %v537
    %730 = vmatprep.mubr.bf16.mxu0 %v97
    %731 = vmatmul.mubr.bf16.gmra.mrb[0].mxu0 %v96
    %v732 = vpop.f32.mrb[0].mxu0
    %v733 = vadd.f32 %v693, %v732
    %v734 = vpop.f32.mrb[0].mxu0
    %v735 = vpop.f32.mrb[0].mxu0
    %v736 = vpop.f32.mrb[0].mxu0
    %737 = vdwg.mxu0
    %738 = vmatprep.subr.bf16.mxu0 0
    %739 = vmatpush1.bf16.msra.mxu0 %v538
    %740 = vmatprep.subr.bf16.mxu0 0
    %741 = vmatpush1.bf16.msra.mxu0 %v539
    %742 = vmatprep.subr.bf16.mxu0 0
    %743 = vmatpush1.bf16.msra.mxu0 %v540
    %744 = vmatprep.subr.bf16.mxu0 0
    %745 = vmatpush1.bf16.msra.mxu0 %v541
    %746 = vmatprep.subr.bf16.mxu0 0
    %747 = vmatpush1.bf16.msra.mxu0 %v542
    %748 = vmatprep.subr.bf16.mxu0 0
    %749 = vmatpush1.bf16.msra.mxu0 %v543
    %750 = vmatprep.subr.bf16.mxu0 0
    %751 = vmatpush1.bf16.msra.mxu0 %v544
    %752 = vmatprep.subr.bf16.mxu0 0
    %753 = vmatpush1.bf16.msra.mxu0 %v545
    %754 = vmatprep.subr.bf16.mxu0 0
    %755 = vmatpush1.bf16.msra.mxu0 %v546
    %756 = vmatprep.subr.bf16.mxu0 0
    %757 = vmatpush1.bf16.msra.mxu0 %v547
    %758 = vmatprep.subr.bf16.mxu0 0
    %759 = vmatpush1.bf16.msra.mxu0 %v548
    %760 = vmatprep.subr.bf16.mxu0 0
    %761 = vmatpush1.bf16.msra.mxu0 %v549
    %762 = vmatprep.subr.bf16.mxu0 0
    %763 = vmatpush1.bf16.msra.mxu0 %v550
    %764 = vmatprep.subr.bf16.mxu0 0
    %765 = vmatpush1.bf16.msra.mxu0 %v551
    %766 = vmatprep.subr.bf16.mxu0 0
    %767 = vmatpush1.bf16.msra.mxu0 %v552
    %768 = vmatprep.subr.bf16.mxu0 0
    %769 = vmatpush1.bf16.msra.mxu0 %v553
    %770 = vmatprep.mubr.bf16.mxu0 %v99
    %771 = vmatmul.mubr.bf16.gmra.mrb[0].mxu0 %v98
    %v772 = vpop.f32.mrb[0].mxu0
    %v773 = vadd.f32 %v733, %v772
    %v774 = vpop.f32.mrb[0].mxu0
    %v775 = vpop.f32.mrb[0].mxu0
    %v776 = vpop.f32.mrb[0].mxu0
    %777 = vdwg.mxu0
    %v778 = vmax.f32 %v773, 0.0
    %v779 = vpack.c.bf16 %v778, %v778
    %v780 = vld [vmem:[#allocation7] sm:$0xf]
    %v781 = vld [vmem:[#allocation7 + $0x4] sm:$0xf]
    %v782 = vld [vmem:[#allocation7 + $0x8] sm:$0xf]
    %v783 = vld [vmem:[#allocation7 + $0xc] sm:$0xf]
    %v784 = vld [vmem:[#allocation7 + $0x10] sm:$0xf]
    %v785 = vld [vmem:[#allocation7 + $0x14] sm:$0xf]
    %v786 = vld [vmem:[#allocation7 + $0x18] sm:$0xf]
    %v787 = vld [vmem:[#allocation7 + $0x1c] sm:$0xf]
    %v788 = vld [vmem:[#allocation7 + $0x20] sm:$0xf]
    %v789 = vld [vmem:[#allocation7 + $0x24] sm:$0xf]
    %v790 = vld [vmem:[#allocation7 + $0x28] sm:$0xf]
    %v791 = vld [vmem:[#allocation7 + $0x2c] sm:$0xf]
    %v792 = vld [vmem:[#allocation7 + $0x30] sm:$0xf]
    %v793 = vld [vmem:[#allocation7 + $0x34] sm:$0xf]
    %v794 = vld [vmem:[#allocation7 + $0x38] sm:$0xf]
    %v795 = vld [vmem:[#allocation7 + $0x3c] sm:$0xf]
    %v797 = vlaneseq
    %v798 = vshrl.u32 %v797, 7
    %v799 = vsub.s32 0, %v798
    %v800 = vrot.slane %v82, %v799
    %v818 = vunpack.c.l.b16 %v780
    %v819 = vunpack.c.l.b16 %v781
    %v820 = vunpack.c.l.b16 %v782
    %v821 = vunpack.c.l.b16 %v783
    %v822 = vunpack.c.l.b16 %v784
    %v823 = vunpack.c.l.b16 %v785
    %v824 = vunpack.c.l.b16 %v786
    %v825 = vunpack.c.l.b16 %v787
    %v826 = vunpack.c.l.b16 %v788
    %v827 = vunpack.c.l.b16 %v789
    %v828 = vunpack.c.l.b16 %v790
    %v829 = vunpack.c.l.b16 %v791
    %v830 = vunpack.c.l.b16 %v792
    %v831 = vunpack.c.l.b16 %v793
    %v832 = vunpack.c.l.b16 %v794
    %v833 = vunpack.c.l.b16 %v795
    %v834 = vpack.c.b16 %v819, %v818
    %v835 = vpack.c.b16 %v821, %v820
    %v836 = vpack.c.b16 %v823, %v822
    %v837 = vpack.c.b16 %v825, %v824
    %v838 = vpack.c.b16 %v827, %v826
    %v839 = vpack.c.b16 %v829, %v828
    %v840 = vpack.c.b16 %v831, %v830
    %v841 = vpack.c.b16 %v833, %v832
    %850 = vmatprep.subr.bf16.mxu0 0
    %851 = vmatpush1.bf16.msra.mxu0 %v834
    %852 = vmatprep.subr.bf16.mxu0 0
    %853 = vmatpush1.bf16.msra.mxu0 %v835
    %854 = vmatprep.subr.bf16.mxu0 0
    %855 = vmatpush1.bf16.msra.mxu0 %v836
    %856 = vmatprep.subr.bf16.mxu0 0
    %857 = vmatpush1.bf16.msra.mxu0 %v837
    %858 = vmatprep.subr.bf16.mxu0 0
    %859 = vmatpush1.bf16.msra.mxu0 %v838
    %860 = vmatprep.subr.bf16.mxu0 0
    %861 = vmatpush1.bf16.msra.mxu0 %v839
    %862 = vmatprep.subr.bf16.mxu0 0
    %863 = vmatpush1.bf16.msra.mxu0 %v840
    %864 = vmatprep.subr.bf16.mxu0 0
    %865 = vmatpush1.bf16.msra.mxu0 %v841
    %866 = vmatprep.subr.bf16.mxu0 0
    %867 = vmatpush1.bf16.msra.mxu0 0
    %868 = vmatprep.subr.bf16.mxu0 0
    %869 = vmatpush1.bf16.msra.mxu0 0
    %870 = vmatprep.subr.bf16.mxu0 0
    %871 = vmatpush1.bf16.msra.mxu0 0
    %872 = vmatprep.subr.bf16.mxu0 0
    %873 = vmatpush1.bf16.msra.mxu0 0
    %874 = vmatprep.subr.bf16.mxu0 0
    %875 = vmatpush1.bf16.msra.mxu0 0
    %876 = vmatprep.subr.bf16.mxu0 0
    %877 = vmatpush1.bf16.msra.mxu0 0
    %878 = vmatprep.subr.bf16.mxu0 0
    %879 = vmatpush1.bf16.msra.mxu0 0
    %880 = vmatprep.subr.bf16.mxu0 0
    %881 = vmatpush1.bf16.msra.mxu0 0
    %882 = vmatprep.mubr.bf16.mxu0 0
    %883 = vmatmul.mubr.bf16.gmra.mrb[0].mxu0 %v779
    %v884 = vpop.f32.mrb[0].mxu0
    %v885 = vadd.f32 %v800, %v884
    %v886 = vpop.f32.mrb[0].mxu0
    %v887 = vpop.f32.mrb[0].mxu0
    %v888 = vpop.f32.mrb[0].mxu0
    %889 = vdwg.mxu0
    %v890 = vmax.f32 %v885, 0.0
    %v891 = vpack.c.bf16 %v890, %v890
    %v892 = vld [vmem:[#allocation8] sm:$0xff]
    %v893 = vld [vmem:[#allocation8 + $0x8] sm:$0xff]
    %v894 = vld [vmem:[#allocation8 + $0x10] sm:$0xff]
    %v895 = vld [vmem:[#allocation8 + $0x18] sm:$0xff]
    %v896 = vld [vmem:[#allocation8 + $0x20] sm:$0xff]
    %v897 = vld [vmem:[#allocation8 + $0x28] sm:$0xff]
    %v898 = vld [vmem:[#allocation8 + $0x30] sm:$0xff]
    %v899 = vld [vmem:[#allocation8 + $0x38] sm:$0xff]
    %v900 = vld [vmem:[#allocation8 + $0x40] sm:$0xff]
    %v901 = vld [vmem:[#allocation8 + $0x48] sm:$0xff]
    %v902 = vld [vmem:[#allocation8 + $0x50] sm:$0xff]
    %v903 = vld [vmem:[#allocation8 + $0x58] sm:$0xff]
    %v904 = vld [vmem:[#allocation8 + $0x60] sm:$0xff]
    %v905 = vld [vmem:[#allocation8 + $0x68] sm:$0xff]
    %v906 = vld [vmem:[#allocation8 + $0x70] sm:$0xff]
    %v907 = vld [vmem:[#allocation8 + $0x78] sm:$0xff]
    %v908 = vld [vmem:[#allocation8 + $0x80] sm:$0xff]
    %v909 = vld [vmem:[#allocation8 + $0x88] sm:$0xff]
    %v910 = vld [vmem:[#allocation8 + $0x90] sm:$0xff]
    %v911 = vld [vmem:[#allocation8 + $0x98] sm:$0xff]
    %v912 = vld [vmem:[#allocation8 + $0xa0] sm:$0xff]
    %v913 = vld [vmem:[#allocation8 + $0xa8] sm:$0xff]
    %v914 = vld [vmem:[#allocation8 + $0xb0] sm:$0xff]
    %v915 = vld [vmem:[#allocation8 + $0xb8] sm:$0xff]
    %v916 = vld [vmem:[#allocation8 + $0xc0] sm:$0xff]
    %v917 = vld [vmem:[#allocation8 + $0xc8] sm:$0xff]
    %v918 = vld [vmem:[#allocation8 + $0xd0] sm:$0xff]
    %v919 = vld [vmem:[#allocation8 + $0xd8] sm:$0xff]
    %v920 = vld [vmem:[#allocation8 + $0xe0] sm:$0xff]
    %v921 = vld [vmem:[#allocation8 + $0xe8] sm:$0xff]
    %v922 = vld [vmem:[#allocation8 + $0xf0] sm:$0xff]
    %v923 = vld [vmem:[#allocation8 + $0xf8] sm:$0xff]
    %v924 = vld [vmem:[#allocation8 + $0x100] sm:$0xff]
    %v925 = vld [vmem:[#allocation8 + $0x108] sm:$0xff]
    %v926 = vld [vmem:[#allocation8 + $0x110] sm:$0xff]
    %v927 = vld [vmem:[#allocation8 + $0x118] sm:$0xff]
    %v928 = vld [vmem:[#allocation8 + $0x120] sm:$0xff]
    %v929 = vld [vmem:[#allocation8 + $0x128] sm:$0xff]
    %v930 = vld [vmem:[#allocation8 + $0x130] sm:$0xff]
    %v931 = vld [vmem:[#allocation8 + $0x138] sm:$0xff]
    %v932 = vld [vmem:[#allocation8 + $0x140] sm:$0xff]
    %v933 = vld [vmem:[#allocation8 + $0x148] sm:$0xff]
    %v934 = vld [vmem:[#allocation8 + $0x150] sm:$0xff]
    %v935 = vld [vmem:[#allocation8 + $0x158] sm:$0xff]
    %v936 = vld [vmem:[#allocation8 + $0x160] sm:$0xff]
    %v937 = vld [vmem:[#allocation8 + $0x168] sm:$0xff]
    %v938 = vld [vmem:[#allocation8 + $0x170] sm:$0xff]
    %v939 = vld [vmem:[#allocation8 + $0x178] sm:$0xff]
    %v940 = vld [vmem:[#allocation8 + $0x180] sm:$0xff]
    %v941 = vld [vmem:[#allocation8 + $0x188] sm:$0xff]
    %v942 = vld [vmem:[#allocation8 + $0x190] sm:$0xff]
    %v943 = vld [vmem:[#allocation8 + $0x198] sm:$0xff]
    %v944 = vld [vmem:[#allocation8 + $0x1a0] sm:$0xff]
    %v945 = vld [vmem:[#allocation8 + $0x1a8] sm:$0xff]
    %v946 = vld [vmem:[#allocation8 + $0x1b0] sm:$0xff]
    %v947 = vld [vmem:[#allocation8 + $0x1b8] sm:$0xff]
    %v948 = vld [vmem:[#allocation8 + $0x1c0] sm:$0xff]
    %v949 = vld [vmem:[#allocation8 + $0x1c8] sm:$0xff]
    %v950 = vld [vmem:[#allocation8 + $0x1d0] sm:$0xff]
    %v951 = vld [vmem:[#allocation8 + $0x1d8] sm:$0xff]
    %v952 = vld [vmem:[#allocation8 + $0x1e0] sm:$0xff]
    %v953 = vld [vmem:[#allocation8 + $0x1e8] sm:$0xff]
    %v954 = vld [vmem:[#allocation8 + $0x1f0] sm:$0xff]
    %v955 = vld [vmem:[#allocation8 + $0x1f8] sm:$0xff]
    %v957 = vlaneseq
    %v958 = vshrl.u32 %v957, 7
    %v959 = vsub.s32 0, %v958
    %v960 = vrot.slane %v83, %v959
    %v961 = vlaneseq
    %v962 = vshrl.u32 %v961, 7
    %v963 = vsub.s32 1, %v962
    %v964 = vrot.slane %v83, %v963
    %v965 = vlaneseq
    %v966 = vshrl.u32 %v965, 7
    %v967 = vsub.s32 2, %v966
    %v968 = vrot.slane %v83, %v967
    %v969 = vlaneseq
    %v970 = vshrl.u32 %v969, 7
    %v971 = vsub.s32 3, %v970
    %v972 = vrot.slane %v83, %v971
    %v973 = vlaneseq
    %v974 = vshrl.u32 %v973, 7
    %v975 = vsub.s32 4, %v974
    %v976 = vrot.slane %v83, %v975
    %v977 = vlaneseq
    %v978 = vshrl.u32 %v977, 7
    %v979 = vsub.s32 5, %v978
    %v980 = vrot.slane %v83, %v979
    %v981 = vlaneseq
    %v982 = vshrl.u32 %v981, 7
    %v983 = vsub.s32 6, %v982
    %v984 = vrot.slane %v83, %v983
    %v985 = vlaneseq
    %v986 = vshrl.u32 %v985, 7
    %v987 = vsub.s32 7, %v986
    %v988 = vrot.slane %v83, %v987
    %v1061 = vunpack.c.l.b16 %v892
    %v1062 = vunpack.c.h.b16 %v892
    %v1063 = vunpack.c.l.b16 %v893
    %v1064 = vunpack.c.h.b16 %v893
    %v1065 = vunpack.c.l.b16 %v894
    %v1066 = vunpack.c.h.b16 %v894
    %v1067 = vunpack.c.l.b16 %v895
    %v1068 = vunpack.c.h.b16 %v895
    %v1069 = vunpack.c.l.b16 %v896
    %v1070 = vunpack.c.h.b16 %v896
    %v1071 = vunpack.c.l.b16 %v897
    %v1072 = vunpack.c.h.b16 %v897
    %v1073 = vunpack.c.l.b16 %v898
    %v1074 = vunpack.c.h.b16 %v898
    %v1075 = vunpack.c.l.b16 %v899
    %v1076 = vunpack.c.h.b16 %v899
    %v1077 = vunpack.c.l.b16 %v900
    %v1078 = vunpack.c.h.b16 %v900
    %v1079 = vunpack.c.l.b16 %v901
    %v1080 = vunpack.c.h.b16 %v901
    %v1081 = vunpack.c.l.b16 %v902
    %v1082 = vunpack.c.h.b16 %v902
    %v1083 = vunpack.c.l.b16 %v903
    %v1084 = vunpack.c.h.b16 %v903
    %v1085 = vunpack.c.l.b16 %v904
    %v1086 = vunpack.c.h.b16 %v904
    %v1087 = vunpack.c.l.b16 %v905
    %v1088 = vunpack.c.h.b16 %v905
    %v1089 = vunpack.c.l.b16 %v906
    %v1090 = vunpack.c.h.b16 %v906
    %v1091 = vunpack.c.l.b16 %v907
    %v1092 = vunpack.c.h.b16 %v907
    %v1093 = vunpack.c.l.b16 %v908
    %v1094 = vunpack.c.h.b16 %v908
    %v1095 = vunpack.c.l.b16 %v909
    %v1096 = vunpack.c.h.b16 %v909
    %v1097 = vunpack.c.l.b16 %v910
    %v1098 = vunpack.c.h.b16 %v910
    %v1099 = vunpack.c.l.b16 %v911
    %v1100 = vunpack.c.h.b16 %v911
    %v1101 = vunpack.c.l.b16 %v912
    %v1102 = vunpack.c.h.b16 %v912
    %v1103 = vunpack.c.l.b16 %v913
    %v1104 = vunpack.c.h.b16 %v913
    %v1105 = vunpack.c.l.b16 %v914
    %v1106 = vunpack.c.h.b16 %v914
    %v1107 = vunpack.c.l.b16 %v915
    %v1108 = vunpack.c.h.b16 %v915
    %v1109 = vunpack.c.l.b16 %v916
    %v1110 = vunpack.c.h.b16 %v916
    %v1111 = vunpack.c.l.b16 %v917
    %v1112 = vunpack.c.h.b16 %v917
    %v1113 = vunpack.c.l.b16 %v918
    %v1114 = vunpack.c.h.b16 %v918
    %v1115 = vunpack.c.l.b16 %v919
    %v1116 = vunpack.c.h.b16 %v919
    %v1117 = vunpack.c.l.b16 %v920
    %v1118 = vunpack.c.h.b16 %v920
    %v1119 = vunpack.c.l.b16 %v921
    %v1120 = vunpack.c.h.b16 %v921
    %v1121 = vunpack.c.l.b16 %v922
    %v1122 = vunpack.c.h.b16 %v922
    %v1123 = vunpack.c.l.b16 %v923
    %v1124 = vunpack.c.h.b16 %v923
    %v1125 = vunpack.c.l.b16 %v924
    %v1126 = vunpack.c.h.b16 %v924
    %v1127 = vunpack.c.l.b16 %v925
    %v1128 = vunpack.c.h.b16 %v925
    %v1129 = vunpack.c.l.b16 %v926
    %v1130 = vunpack.c.h.b16 %v926
    %v1131 = vunpack.c.l.b16 %v927
    %v1132 = vunpack.c.h.b16 %v927
    %v1133 = vunpack.c.l.b16 %v928
    %v1134 = vunpack.c.h.b16 %v928
    %v1135 = vunpack.c.l.b16 %v929
    %v1136 = vunpack.c.h.b16 %v929
    %v1137 = vunpack.c.l.b16 %v930
    %v1138 = vunpack.c.h.b16 %v930
    %v1139 = vunpack.c.l.b16 %v931
    %v1140 = vunpack.c.h.b16 %v931
    %v1141 = vunpack.c.l.b16 %v932
    %v1142 = vunpack.c.h.b16 %v932
    %v1143 = vunpack.c.l.b16 %v933
    %v1144 = vunpack.c.h.b16 %v933
    %v1145 = vunpack.c.l.b16 %v934
    %v1146 = vunpack.c.h.b16 %v934
    %v1147 = vunpack.c.l.b16 %v935
    %v1148 = vunpack.c.h.b16 %v935
    %v1149 = vunpack.c.l.b16 %v936
    %v1150 = vunpack.c.h.b16 %v936
    %v1151 = vunpack.c.l.b16 %v937
    %v1152 = vunpack.c.h.b16 %v937
    %v1153 = vunpack.c.l.b16 %v938
    %v1154 = vunpack.c.h.b16 %v938
    %v1155 = vunpack.c.l.b16 %v939
    %v1156 = vunpack.c.h.b16 %v939
    %v1157 = vunpack.c.l.b16 %v940
    %v1158 = vunpack.c.h.b16 %v940
    %v1159 = vunpack.c.l.b16 %v941
    %v1160 = vunpack.c.h.b16 %v941
    %v1161 = vunpack.c.l.b16 %v942
    %v1162 = vunpack.c.h.b16 %v942
    %v1163 = vunpack.c.l.b16 %v943
    %v1164 = vunpack.c.h.b16 %v943
    %v1165 = vunpack.c.l.b16 %v944
    %v1166 = vunpack.c.h.b16 %v944
    %v1167 = vunpack.c.l.b16 %v945
    %v1168 = vunpack.c.h.b16 %v945
    %v1169 = vunpack.c.l.b16 %v946
    %v1170 = vunpack.c.h.b16 %v946
    %v1171 = vunpack.c.l.b16 %v947
    %v1172 = vunpack.c.h.b16 %v947
    %v1173 = vunpack.c.l.b16 %v948
    %v1174 = vunpack.c.h.b16 %v948
    %v1175 = vunpack.c.l.b16 %v949
    %v1176 = vunpack.c.h.b16 %v949
    %v1177 = vunpack.c.l.b16 %v950
    %v1178 = vunpack.c.h.b16 %v950
    %v1179 = vunpack.c.l.b16 %v951
    %v1180 = vunpack.c.h.b16 %v951
    %v1181 = vunpack.c.l.b16 %v952
    %v1182 = vunpack.c.h.b16 %v952
    %v1183 = vunpack.c.l.b16 %v953
    %v1184 = vunpack.c.h.b16 %v953
    %v1185 = vunpack.c.l.b16 %v954
    %v1186 = vunpack.c.h.b16 %v954
    %v1187 = vunpack.c.l.b16 %v955
    %v1188 = vunpack.c.h.b16 %v955
    %v1189 = vpack.c.b16 %v1069, %v1061
    %v1190 = vpack.c.b16 %v1070, %v1062
    %v1191 = vpack.c.b16 %v1071, %v1063
    %v1192 = vpack.c.b16 %v1072, %v1064
    %v1193 = vpack.c.b16 %v1073, %v1065
    %v1194 = vpack.c.b16 %v1074, %v1066
    %v1195 = vpack.c.b16 %v1075, %v1067
    %v1196 = vpack.c.b16 %v1076, %v1068
    %v1197 = vpack.c.b16 %v1085, %v1077
    %v1198 = vpack.c.b16 %v1086, %v1078
    %v1199 = vpack.c.b16 %v1087, %v1079
    %v1200 = vpack.c.b16 %v1088, %v1080
    %v1201 = vpack.c.b16 %v1089, %v1081
    %v1202 = vpack.c.b16 %v1090, %v1082
    %v1203 = vpack.c.b16 %v1091, %v1083
    %v1204 = vpack.c.b16 %v1092, %v1084
    %v1205 = vpack.c.b16 %v1101, %v1093
    %v1206 = vpack.c.b16 %v1102, %v1094
    %v1207 = vpack.c.b16 %v1103, %v1095
    %v1208 = vpack.c.b16 %v1104, %v1096
    %v1209 = vpack.c.b16 %v1105, %v1097
    %v1210 = vpack.c.b16 %v1106, %v1098
    %v1211 = vpack.c.b16 %v1107, %v1099
    %v1212 = vpack.c.b16 %v1108, %v1100
    %v1213 = vpack.c.b16 %v1117, %v1109
    %v1214 = vpack.c.b16 %v1118, %v1110
    %v1215 = vpack.c.b16 %v1119, %v1111
    %v1216 = vpack.c.b16 %v1120, %v1112
    %v1217 = vpack.c.b16 %v1121, %v1113
    %v1218 = vpack.c.b16 %v1122, %v1114
    %v1219 = vpack.c.b16 %v1123, %v1115
    %v1220 = vpack.c.b16 %v1124, %v1116
    %v1221 = vpack.c.b16 %v1133, %v1125
    %v1222 = vpack.c.b16 %v1134, %v1126
    %v1223 = vpack.c.b16 %v1135, %v1127
    %v1224 = vpack.c.b16 %v1136, %v1128
    %v1225 = vpack.c.b16 %v1137, %v1129
    %v1226 = vpack.c.b16 %v1138, %v1130
    %v1227 = vpack.c.b16 %v1139, %v1131
    %v1228 = vpack.c.b16 %v1140, %v1132
    %v1229 = vpack.c.b16 %v1149, %v1141
    %v1230 = vpack.c.b16 %v1150, %v1142
    %v1231 = vpack.c.b16 %v1151, %v1143
    %v1232 = vpack.c.b16 %v1152, %v1144
    %v1233 = vpack.c.b16 %v1153, %v1145
    %v1234 = vpack.c.b16 %v1154, %v1146
    %v1235 = vpack.c.b16 %v1155, %v1147
    %v1236 = vpack.c.b16 %v1156, %v1148
    %v1237 = vpack.c.b16 %v1165, %v1157
    %v1238 = vpack.c.b16 %v1166, %v1158
    %v1239 = vpack.c.b16 %v1167, %v1159
    %v1240 = vpack.c.b16 %v1168, %v1160
    %v1241 = vpack.c.b16 %v1169, %v1161
    %v1242 = vpack.c.b16 %v1170, %v1162
    %v1243 = vpack.c.b16 %v1171, %v1163
    %v1244 = vpack.c.b16 %v1172, %v1164
    %v1245 = vpack.c.b16 %v1181, %v1173
    %v1246 = vpack.c.b16 %v1182, %v1174
    %v1247 = vpack.c.b16 %v1183, %v1175
    %v1248 = vpack.c.b16 %v1184, %v1176
    %v1249 = vpack.c.b16 %v1185, %v1177
    %v1250 = vpack.c.b16 %v1186, %v1178
    %v1251 = vpack.c.b16 %v1187, %v1179
    %v1252 = vpack.c.b16 %v1188, %v1180
    %1317 = vmatprep.subr.bf16.mxu0 %v1190
    %1318 = vmatpush1.bf16.msra.mxu0 %v1189
    %1319 = vmatprep.subr.bf16.mxu0 %v1198
    %1320 = vmatpush1.bf16.msra.mxu0 %v1197
    %1321 = vmatprep.subr.bf16.mxu0 %v1206
    %1322 = vmatpush1.bf16.msra.mxu0 %v1205
    %1323 = vmatprep.subr.bf16.mxu0 %v1214
    %1324 = vmatpush1.bf16.msra.mxu0 %v1213
    %1325 = vmatprep.subr.bf16.mxu0 %v1222
    %1326 = vmatpush1.bf16.msra.mxu0 %v1221
    %1327 = vmatprep.subr.bf16.mxu0 %v1230
    %1328 = vmatpush1.bf16.msra.mxu0 %v1229
    %1329 = vmatprep.subr.bf16.mxu0 %v1238
    %1330 = vmatpush1.bf16.msra.mxu0 %v1237
    %1331 = vmatprep.subr.bf16.mxu0 %v1246
    %1332 = vmatpush1.bf16.msra.mxu0 %v1245
    %1333 = vmatprep.subr.bf16.mxu0 0
    %1334 = vmatpush1.bf16.msra.mxu0 0
    %1335 = vmatprep.subr.bf16.mxu0 0
    %1336 = vmatpush1.bf16.msra.mxu0 0
    %1337 = vmatprep.subr.bf16.mxu0 0
    %1338 = vmatpush1.bf16.msra.mxu0 0
    %1339 = vmatprep.subr.bf16.mxu0 0
    %1340 = vmatpush1.bf16.msra.mxu0 0
    %1341 = vmatprep.subr.bf16.mxu0 0
    %1342 = vmatpush1.bf16.msra.mxu0 0
    %1343 = vmatprep.subr.bf16.mxu0 0
    %1344 = vmatpush1.bf16.msra.mxu0 0
    %1345 = vmatprep.subr.bf16.mxu0 0
    %1346 = vmatpush1.bf16.msra.mxu0 0
    %1347 = vmatprep.subr.bf16.mxu0 0
    %1348 = vmatpush1.bf16.msra.mxu0 0
    %1349 = vmatprep.mubr.bf16.mxu0 0
    %1350 = vmatmul.mubr.bf16.gmra.mrb[0].mxu0 %v891
    %v1351 = vpop.f32.mrb[0].mxu0
    %v1352 = vadd.f32 %v960, %v1351
    %v1353 = vpop.f32.mrb[0].mxu0
    %v1354 = vadd.f32 %v964, %v1353
    %v1355 = vpop.f32.mrb[0].mxu0
    %v1356 = vpop.f32.mrb[0].mxu0
    %1357 = vdwg.mxu0
    %1358 = vmatprep.subr.bf16.mxu0 %v1192
    %1359 = vmatpush1.bf16.msra.mxu0 %v1191
    %1360 = vmatprep.subr.bf16.mxu0 %v1200
    %1361 = vmatpush1.bf16.msra.mxu0 %v1199
    %1362 = vmatprep.subr.bf16.mxu0 %v1208
    %1363 = vmatpush1.bf16.msra.mxu0 %v1207
    %1364 = vmatprep.subr.bf16.mxu0 %v1216
    %1365 = vmatpush1.bf16.msra.mxu0 %v1215
    %1366 = vmatprep.subr.bf16.mxu0 %v1224
    %1367 = vmatpush1.bf16.msra.mxu0 %v1223
    %1368 = vmatprep.subr.bf16.mxu0 %v1232
    %1369 = vmatpush1.bf16.msra.mxu0 %v1231
    %1370 = vmatprep.subr.bf16.mxu0 %v1240
    %1371 = vmatpush1.bf16.msra.mxu0 %v1239
    %1372 = vmatprep.subr.bf16.mxu0 %v1248
    %1373 = vmatpush1.bf16.msra.mxu0 %v1247
    %1374 = vmatprep.subr.bf16.mxu0 0
    %1375 = vmatpush1.bf16.msra.mxu0 0
    %1376 = vmatprep.subr.bf16.mxu0 0
    %1377 = vmatpush1.bf16.msra.mxu0 0
    %1378 = vmatprep.subr.bf16.mxu0 0
    %1379 = vmatpush1.bf16.msra.mxu0 0
    %1380 = vmatprep.subr.bf16.mxu0 0
    %1381 = vmatpush1.bf16.msra.mxu0 0
    %1382 = vmatprep.subr.bf16.mxu0 0
    %1383 = vmatpush1.bf16.msra.mxu0 0
    %1384 = vmatprep.subr.bf16.mxu0 0
    %1385 = vmatpush1.bf16.msra.mxu0 0
    %1386 = vmatprep.subr.bf16.mxu0 0
    %1387 = vmatpush1.bf16.msra.mxu0 0
    %1388 = vmatprep.subr.bf16.mxu0 0
    %1389 = vmatpush1.bf16.msra.mxu0 0
    %1390 = vmatprep.mubr.bf16.mxu0 0
    %1391 = vmatmul.mubr.bf16.gmra.mrb[0].mxu0 %v891
    %v1392 = vpop.f32.mrb[0].mxu0
    %v1393 = vadd.f32 %v968, %v1392
    %v1394 = vpop.f32.mrb[0].mxu0
    %v1395 = vadd.f32 %v972, %v1394
    %v1396 = vpop.f32.mrb[0].mxu0
    %v1397 = vpop.f32.mrb[0].mxu0
    %1398 = vdwg.mxu0
    %1399 = vmatprep.subr.bf16.mxu0 %v1194
    %1400 = vmatpush1.bf16.msra.mxu0 %v1193
    %1401 = vmatprep.subr.bf16.mxu0 %v1202
    %1402 = vmatpush1.bf16.msra.mxu0 %v1201
    %1403 = vmatprep.subr.bf16.mxu0 %v1210
    %1404 = vmatpush1.bf16.msra.mxu0 %v1209
    %1405 = vmatprep.subr.bf16.mxu0 %v1218
    %1406 = vmatpush1.bf16.msra.mxu0 %v1217
    %1407 = vmatprep.subr.bf16.mxu0 %v1226
    %1408 = vmatpush1.bf16.msra.mxu0 %v1225
    %1409 = vmatprep.subr.bf16.mxu0 %v1234
    %1410 = vmatpush1.bf16.msra.mxu0 %v1233
    %1411 = vmatprep.subr.bf16.mxu0 %v1242
    %1412 = vmatpush1.bf16.msra.mxu0 %v1241
    %1413 = vmatprep.subr.bf16.mxu0 %v1250
    %1414 = vmatpush1.bf16.msra.mxu0 %v1249
    %1415 = vmatprep.subr.bf16.mxu0 0
    %1416 = vmatpush1.bf16.msra.mxu0 0
    %1417 = vmatprep.subr.bf16.mxu0 0
    %1418 = vmatpush1.bf16.msra.mxu0 0
    %1419 = vmatprep.subr.bf16.mxu0 0
    %1420 = vmatpush1.bf16.msra.mxu0 0
    %1421 = vmatprep.subr.bf16.mxu0 0
    %1422 = vmatpush1.bf16.msra.mxu0 0
    %1423 = vmatprep.subr.bf16.mxu0 0
    %1424 = vmatpush1.bf16.msra.mxu0 0
    %1425 = vmatprep.subr.bf16.mxu0 0
    %1426 = vmatpush1.bf16.msra.mxu0 0
    %1427 = vmatprep.subr.bf16.mxu0 0
    %1428 = vmatpush1.bf16.msra.mxu0 0
    %1429 = vmatprep.subr.bf16.mxu0 0
    %1430 = vmatpush1.bf16.msra.mxu0 0
    %1431 = vmatprep.mubr.bf16.mxu0 0
    %1432 = vmatmul.mubr.bf16.gmra.mrb[0].mxu0 %v891
    %v1433 = vpop.f32.mrb[0].mxu0
    %v1434 = vadd.f32 %v976, %v1433
    %v1435 = vpop.f32.mrb[0].mxu0
    %v1436 = vadd.f32 %v980, %v1435
    %v1437 = vpop.f32.mrb[0].mxu0
    %v1438 = vpop.f32.mrb[0].mxu0
    %1439 = vdwg.mxu0
    %1440 = vmatprep.subr.bf16.mxu0 %v1196
    %1441 = vmatpush1.bf16.msra.mxu0 %v1195
    %1442 = vmatprep.subr.bf16.mxu0 %v1204
    %1443 = vmatpush1.bf16.msra.mxu0 %v1203
    %1444 = vmatprep.subr.bf16.mxu0 %v1212
    %1445 = vmatpush1.bf16.msra.mxu0 %v1211
    %1446 = vmatprep.subr.bf16.mxu0 %v1220
    %1447 = vmatpush1.bf16.msra.mxu0 %v1219
    %1448 = vmatprep.subr.bf16.mxu0 %v1228
    %1449 = vmatpush1.bf16.msra.mxu0 %v1227
    %1450 = vmatprep.subr.bf16.mxu0 %v1236
    %1451 = vmatpush1.bf16.msra.mxu0 %v1235
    %1452 = vmatprep.subr.bf16.mxu0 %v1244
    %1453 = vmatpush1.bf16.msra.mxu0 %v1243
    %1454 = vmatprep.subr.bf16.mxu0 %v1252
    %1455 = vmatpush1.bf16.msra.mxu0 %v1251
    %1456 = vmatprep.subr.bf16.mxu0 0
    %1457 = vmatpush1.bf16.msra.mxu0 0
    %1458 = vmatprep.subr.bf16.mxu0 0
    %1459 = vmatpush1.bf16.msra.mxu0 0
    %1460 = vmatprep.subr.bf16.mxu0 0
    %1461 = vmatpush1.bf16.msra.mxu0 0
    %1462 = vmatprep.subr.bf16.mxu0 0
    %1463 = vmatpush1.bf16.msra.mxu0 0
    %1464 = vmatprep.subr.bf16.mxu0 0
    %1465 = vmatpush1.bf16.msra.mxu0 0
    %1466 = vmatprep.subr.bf16.mxu0 0
    %1467 = vmatpush1.bf16.msra.mxu0 0
    %1468 = vmatprep.subr.bf16.mxu0 0
    %1469 = vmatpush1.bf16.msra.mxu0 0
    %1470 = vmatprep.subr.bf16.mxu0 0
    %1471 = vmatpush1.bf16.msra.mxu0 0
    %1472 = vmatprep.mubr.bf16.mxu0 0
    %1473 = vmatmul.mubr.bf16.gmra.mrb[0].mxu0 %v891
    %v1474 = vpop.f32.mrb[0].mxu0
    %v1475 = vadd.f32 %v984, %v1474
    %v1476 = vpop.f32.mrb[0].mxu0
    %v1477 = vadd.f32 %v988, %v1476
    %v1478 = vpop.f32.mrb[0].mxu0
    %v1479 = vpop.f32.mrb[0].mxu0
    %1480 = vdwg.mxu0
    %1481 = vst [vmem:[#allocation10] sm:$0xff] %v1352
    %1482 = vst [vmem:[#allocation10 + $0x8] sm:$0xff] %v1354
    %1483 = vst [vmem:[#allocation10 + $0x10] sm:$0xff] %v1393
    %1484 = vst [vmem:[#allocation10 + $0x18] sm:$0xff] %v1395
    %1485 = vst [vmem:[#allocation10 + $0x20] sm:$0xff] %v1434
    %1486 = vst [vmem:[#allocation10 + $0x28] sm:$0xff] %v1436
    %1487 = vst [vmem:[#allocation10 + $0x30] sm:$0xff] %v1475
    %1488 = vst [vmem:[#allocation10 + $0x38] sm:$0xff] %v1477
    // Predicated region
    $region46: #{tpu_custom_call.1} parent=1 // pred_check
      _
    $region47: #{tpu_custom_call.1} parent=1 // pred_check_branch
      %1490 = sbr.rel (0) target = $region49
    $region48: #{tpu_custom_call.1} parent=1 // pred_region
      %s1492 = ssub.s32 1024, 1024
      %1493 = vsyncadd [#allocation4], %s1492
      %s1495 = sshll.u32 [#allocation10], 4
      %s1496 = int_to_ptr.vmem [resolvable:$true] %s1495
      %1498 = dma.vmem_to_hbm [thread:$0]  %s1496, 1024, %s7, [#allocation4]
    $region49: #{tpu_custom_call.1} parent=1 // pred_fallthru
      _
    // Predicated region
    $region50: #{tpu_custom_call.1} parent=1 // pred_check
      _
    $region51: #{tpu_custom_call.1} parent=1 // pred_check_branch
      %1500 = sbr.rel (0) target = $region53
    $region52: #{tpu_custom_call.1} parent=1 // pred_region
      %1501 = dma.done [#allocation4], 1024
    $region53: #{tpu_custom_call.1} parent=1 // pred_fallthru
      _
    %1502 = vsyncpa [#allocation3], 1
    %1503 = vsyncpa [#allocation6], 1
    %1504 = vsyncpa [#allocation9], 1
    %1505 = vsyncpa [#allocation4], 1

</llo_original>
